<compile_context>
chip_gen: v5e
topology: v5e:2x2
jax: 0.10.0
libtpu: 0.0.40
codegen_flags: <defaults>
</compile_context>

<pallas_src>
import jax
import jax.numpy as jnp
from jax.experimental import pallas as pl
from jax.experimental.pallas import tpu as pltpu

# Model hyper-parameters (small, consistent with the module's __init__ signature).
INPUT_DIM = 4
HIDDEN = 32
NUM_LAYERS = 2
SEQ_LEN = 8
OUT_LEN = 4


def _make_kernel(num_layers, seq_len, out_len, hidden):
    """Build the Pallas kernel closed over static sizes (fully unrolled recurrence)."""
    H = hidden

    def kernel(x_ref, w_ref, b_ref, out_ref):
        # x_ref  : (seq, H)              f32   input, zero-padded from input_dim to H cols
        # w_ref  : (L, 2H, 4H)           bf16  rows [0:H)=w_ih^T (zero padded rows),
        #                                      rows [H:2H)=w_hh^T; gate order i,f,g,o
        # b_ref  : (L+1, 4H)             f32   row l = b_ih+b_hh; last row = [fc_w | fc_b | 0]
        # out_ref: (1, out_len)          f32   lane-dense output row
        bslab = b_ref[...]                       # (L+1, 4H) f32
        seq_in = x_ref[...]                      # (seq, H)  f32
        hs = []
        for layer in range(num_layers):
            wl = w_ref[layer]                    # (2H, 4H) bf16, loaded once per layer
            wihT = wl[0:H, :]                    # (H, 4H)
            whhT = wl[H:2 * H, :]                # (H, 4H)
            bias = bslab[layer:layer + 1, :]     # (1, 4H)

            # Hoisted input projection: one matmul per layer, off the serial chain.
            gates_in = jnp.dot(seq_in.astype(jnp.bfloat16), wihT,
                               preferred_element_type=jnp.float32) + bias   # (seq, 4H)

            h_bf = jnp.zeros((1, H), jnp.bfloat16)   # recurrent operand kept in bf16
            c = jnp.zeros((1, H), jnp.float32)
            hs = []
            for t in range(seq_len):
                # Only this recurrent matmul sits on the per-step critical path.
                gates = gates_in[t:t + 1, :] + jnp.dot(
                    h_bf, whhT, preferred_element_type=jnp.float32)         # (1, 4H)
                sg = jax.nn.sigmoid(gates)           # one full-width EUP sigmoid
                tg = jnp.tanh(gates)                 # one full-width EUP tanh
                i_g = sg[:, 0:H]
                f_g = sg[:, H:2 * H]
                g_g = tg[:, 2 * H:3 * H]
                o_g = sg[:, 3 * H:4 * H]
                c = f_g * c + i_g * g_g              # f32 VPU (v5e-safe)
                h = o_g * jnp.tanh(c)                # f32 hidden state
                h_bf = h.astype(jnp.bfloat16)        # bf16 copy for next step's MXU dot
                hs.append(h)                         # stays in vregs
            if layer + 1 < num_layers:
                seq_in = jnp.concatenate(hs, axis=0)     # (seq, H) feeds next layer

        # out = relu(fc(output[-out_len:, :])) ; Linear(H -> 1) as multiply + lane reduce,
        # assembled lane-dense as (1, out_len).
        fc_w = bslab[num_layers:num_layers + 1, 0:H]       # (1, H)
        fc_b = bslab[num_layers:num_layers + 1, H:H + 1]   # (1, 1)
        ys = [jnp.sum(hs[seq_len - out_len + j] * fc_w, axis=1, keepdims=True)
              for j in range(out_len)]                     # out_len x (1,1)
        y = jnp.concatenate(ys, axis=1) + fc_b             # (1, out_len)
        out_ref[...] = jnp.maximum(y, 0.0).astype(out_ref.dtype)

    return kernel


def pack_inputs(x, params):
    """Host-side packing: 3 DMA slabs instead of 8 small per-tensor inputs."""
    H = HIDDEN
    x_pad = jnp.zeros((SEQ_LEN, H), jnp.float32).at[:, :INPUT_DIM].set(
        x.astype(jnp.float32))
    wslab = jnp.zeros((NUM_LAYERS, 2 * H, 4 * H), jnp.bfloat16)
    bslab = jnp.zeros((NUM_LAYERS + 1, 4 * H), jnp.float32)
    for l, (wihT, whhT, b) in enumerate(params["layers"]):
        d_in = wihT.shape[0]
        wslab = wslab.at[l, :d_in, :].set(wihT.astype(jnp.bfloat16))
        wslab = wslab.at[l, H:2 * H, :].set(whhT.astype(jnp.bfloat16))
        bslab = bslab.at[l, :].set(b.reshape(4 * H))
    bslab = bslab.at[NUM_LAYERS, :H].set(params["fc_w"].reshape(H))
    bslab = bslab.at[NUM_LAYERS, H].set(params["fc_b"].reshape(()))
    return x_pad, wslab, bslab


def lstm_weather_forward(x, params):
    x_pad, wslab, bslab = pack_inputs(x, params)
    kernel = _make_kernel(NUM_LAYERS, SEQ_LEN, OUT_LEN, HIDDEN)
    vmem = pl.BlockSpec(memory_space=pltpu.MemorySpace.VMEM)   # full-array blocks, no grid
    y_row = pl.pallas_call(
        kernel,
        out_shape=jax.ShapeDtypeStruct((1, OUT_LEN), jnp.float32),
        in_specs=[vmem, vmem, vmem],
        out_specs=vmem,
    )(x_pad, wslab, bslab)
    return y_row.reshape(OUT_LEN, 1)   # module-facing shape (output_length, 1)


def init_params(key):
    """Deterministic synthetic parameters (PyTorch-style U(-1/sqrt(H), 1/sqrt(H))), f32."""
    k = 1.0 / jnp.sqrt(jnp.float32(HIDDEN))
    layers = []
    for layer in range(NUM_LAYERS):
        d_in = INPUT_DIM if layer == 0 else HIDDEN
        key, k1, k2, k3, k4 = jax.random.split(key, 5)
        wihT = jax.random.uniform(k1, (d_in, 4 * HIDDEN), jnp.float32, -k, k)
        whhT = jax.random.uniform(k2, (HIDDEN, 4 * HIDDEN), jnp.float32, -k, k)
        b_ih = jax.random.uniform(k3, (1, 4 * HIDDEN), jnp.float32, -k, k)
        b_hh = jax.random.uniform(k4, (1, 4 * HIDDEN), jnp.float32, -k, k)
        layers.append((wihT, whhT, b_ih + b_hh))
    key, k5, k6 = jax.random.split(key, 3)
    fc_w = jax.random.uniform(k5, (1, HIDDEN), jnp.float32, -k, k)
    fc_b = jax.random.uniform(k6, (1, 1), jnp.float32, -k, k)
    return {"layers": layers, "fc_w": fc_w, "fc_b": fc_b}


def _lstm_forward_ref(x, params, matmul_dtype):
    """Pure-JAX reference. matmul_dtype=bf16 mirrors the kernel's MXU math exactly;
    matmul_dtype=f32 is the 'true' PyTorch-style f32 reference."""
    H = HIDDEN
    seq_in = x.astype(jnp.float32)
    for (wihT, whhT, bias) in params["layers"]:
        gates_in = jnp.dot(seq_in.astype(matmul_dtype), wihT.astype(matmul_dtype),
                           preferred_element_type=jnp.float32) + bias
        h = jnp.zeros((1, H), jnp.float32)
        c = jnp.zeros((1, H), jnp.float32)
        outs = []
        for t in range(SEQ_LEN):
            gates = gates_in[t:t + 1, :] + jnp.dot(
                h.astype(matmul_dtype), whhT.astype(matmul_dtype),
                preferred_element_type=jnp.float32)
            sg = jax.nn.sigmoid(gates)
            tg = jnp.tanh(gates)
            i_g = sg[:, 0:H]
            f_g = sg[:, H:2 * H]
            g_g = tg[:, 2 * H:3 * H]
            o_g = sg[:, 3 * H:4 * H]
            c = f_g * c + i_g * g_g
            h = o_g * jnp.tanh(c)
            outs.append(h)
        seq_in = jnp.concatenate(outs, axis=0)
    tail = seq_in[-OUT_LEN:]
    y = jnp.sum(tail * params["fc_w"], axis=1, keepdims=True) + params["fc_b"]
    return jnp.maximum(y, 0.0)


if __name__ == "__main__":
    key = jax.random.PRNGKey(0)
    key, kx = jax.random.split(key)
    x = jax.random.normal(kx, (SEQ_LEN, INPUT_DIM), jnp.float32)
    params = init_params(key)

    out = lstm_weather_forward(x, params)
    out = jax.block_until_ready(out)
    assert out.shape == (OUT_LEN, 1), out.shape

    # Tight check against a reference that mirrors the kernel's bf16-MXU / f32-elementwise math.
    ref_bf16 = _lstm_forward_ref(x, params, jnp.bfloat16)
    assert jnp.allclose(out, ref_bf16, atol=5e-4, rtol=5e-4), (out, ref_bf16)

    # Looser check against the true f32 (PyTorch-numerics) reference, to bound the bf16 error.
    ref_f32 = _lstm_forward_ref(x, params, jnp.float32)
    assert jnp.allclose(out, ref_f32, atol=5e-2, rtol=5e-2), (out, ref_f32)

    print("KERNEL_OK")
</pallas_src>

<mosaic_0001>
module attributes {stable_mosaic.version = 11 : i64} {
  func.func @kernel(%arg0: memref<8x32xf32, #tpu.memory_space<vmem>>, %arg1: memref<2x64x128xbf16, #tpu.memory_space<vmem>>, %arg2: memref<3x128xf32, #tpu.memory_space<vmem>>, %arg3: memref<1x4xf32, #tpu.memory_space<vmem>>) attributes {dimension_semantics = [], scalar_prefetch = 0 : i64, scratch_operands = 0 : i64, tpu.core_type = #tpu.core_type<tc>} {
    %c0 = arith.constant 0 : index
    %c0_0 = arith.constant 0 : index
    %0 = vector.load %arg2[%c0, %c0_0] : memref<3x128xf32, #tpu.memory_space<vmem>>, vector<3x128xf32>
    %c0_1 = arith.constant 0 : index
    %c0_2 = arith.constant 0 : index
    %1 = vector.load %arg0[%c0_1, %c0_2] : memref<8x32xf32, #tpu.memory_space<vmem>>, vector<8x32xf32>
    %c0_3 = arith.constant 0 : index
    %c0_4 = arith.constant 0 : index
    %c0_5 = arith.constant 0 : index
    %2 = vector.load %arg1[%c0_3, %c0_4, %c0_5] : memref<2x64x128xbf16, #tpu.memory_space<vmem>>, vector<1x64x128xbf16>
    %3 = vector.shape_cast %2 : vector<1x64x128xbf16> to vector<64x128xbf16>
    %4 = vector.extract_strided_slice %3 {offsets = [0, 0], sizes = [32, 128], strides = [1, 1]} : vector<64x128xbf16> to vector<32x128xbf16>
    %5 = vector.extract_strided_slice %3 {offsets = [32, 0], sizes = [32, 128], strides = [1, 1]} : vector<64x128xbf16> to vector<32x128xbf16>
    %6 = vector.extract_strided_slice %0 {offsets = [0, 0], sizes = [1, 128], strides = [1, 1]} : vector<3x128xf32> to vector<1x128xf32>
    %7 = arith.truncf %1 : vector<8x32xf32> to vector<8x32xbf16>
    %cst = arith.constant dense<0.000000e+00> : vector<8x128xf32>
    %8 = tpu.matmul %7, %4, %cst {dimension_numbers = #tpu.dot_dimension_numbers<[1], [0], [0], [1], [0, 0, 1, 1], [], []>} : vector<8x32xbf16>, vector<32x128xbf16>, vector<8x128xf32> -> vector<8x128xf32>
    %9 = vector.broadcast %6 : vector<1x128xf32> to vector<8x128xf32>
    %10 = arith.addf %8, %9 : vector<8x128xf32>
    %cst_6 = arith.constant 0.000000e+00 : bf16
    %11 = vector.broadcast %cst_6 : bf16 to vector<1x32xbf16>
    %cst_7 = arith.constant 0.000000e+00 : f32
    %12 = vector.broadcast %cst_7 : f32 to vector<1x32xf32>
    %13 = vector.extract_strided_slice %10 {offsets = [0, 0], sizes = [1, 128], strides = [1, 1]} : vector<8x128xf32> to vector<1x128xf32>
    %cst_8 = arith.constant dense<0.000000e+00> : vector<1x128xf32>
    %14 = tpu.matmul %11, %5, %cst_8 {dimension_numbers = #tpu.dot_dimension_numbers<[1], [0], [0], [1], [0, 0, 1, 1], [], []>} : vector<1x32xbf16>, vector<32x128xbf16>, vector<1x128xf32> -> vector<1x128xf32>
    %15 = arith.addf %13, %14 : vector<1x128xf32>
    %16 = arith.negf %15 : vector<1x128xf32>
    %17 = math.exp %16 : vector<1x128xf32>
    %cst_9 = arith.constant 1.000000e+00 : f32
    %18 = vector.broadcast %cst_9 : f32 to vector<1x128xf32>
    %19 = arith.addf %18, %17 : vector<1x128xf32>
    %20 = arith.divf %18, %19 : vector<1x128xf32>
    %21 = math.tanh %15 : vector<1x128xf32>
    %22 = vector.extract_strided_slice %20 {offsets = [0, 0], sizes = [1, 32], strides = [1, 1]} : vector<1x128xf32> to vector<1x32xf32>
    %23 = vector.extract_strided_slice %20 {offsets = [0, 32], sizes = [1, 32], strides = [1, 1]} : vector<1x128xf32> to vector<1x32xf32>
    %24 = vector.extract_strided_slice %21 {offsets = [0, 64], sizes = [1, 32], strides = [1, 1]} : vector<1x128xf32> to vector<1x32xf32>
    %25 = vector.extract_strided_slice %20 {offsets = [0, 96], sizes = [1, 32], strides = [1, 1]} : vector<1x128xf32> to vector<1x32xf32>
    %26 = arith.mulf %23, %12 : vector<1x32xf32>
    %27 = arith.mulf %22, %24 : vector<1x32xf32>
    %28 = arith.addf %26, %27 : vector<1x32xf32>
    %29 = math.tanh %28 : vector<1x32xf32>
    %30 = arith.mulf %25, %29 : vector<1x32xf32>
    %31 = arith.truncf %30 : vector<1x32xf32> to vector<1x32xbf16>
    %32 = vector.extract_strided_slice %10 {offsets = [1, 0], sizes = [1, 128], strides = [1, 1]} : vector<8x128xf32> to vector<1x128xf32>
    %cst_10 = arith.constant dense<0.000000e+00> : vector<1x128xf32>
    %33 = tpu.matmul %31, %5, %cst_10 {dimension_numbers = #tpu.dot_dimension_numbers<[1], [0], [0], [1], [0, 0, 1, 1], [], []>} : vector<1x32xbf16>, vector<32x128xbf16>, vector<1x128xf32> -> vector<1x128xf32>
    %34 = arith.addf %32, %33 : vector<1x128xf32>
    %35 = arith.negf %34 : vector<1x128xf32>
    %36 = math.exp %35 : vector<1x128xf32>
    %cst_11 = arith.constant 1.000000e+00 : f32
    %37 = vector.broadcast %cst_11 : f32 to vector<1x128xf32>
    %38 = arith.addf %37, %36 : vector<1x128xf32>
    %39 = arith.divf %37, %38 : vector<1x128xf32>
    %40 = math.tanh %34 : vector<1x128xf32>
    %41 = vector.extract_strided_slice %39 {offsets = [0, 0], sizes = [1, 32], strides = [1, 1]} : vector<1x128xf32> to vector<1x32xf32>
    %42 = vector.extract_strided_slice %39 {offsets = [0, 32], sizes = [1, 32], strides = [1, 1]} : vector<1x128xf32> to vector<1x32xf32>
    %43 = vector.extract_strided_slice %40 {offsets = [0, 64], sizes = [1, 32], strides = [1, 1]} : vector<1x128xf32> to vector<1x32xf32>
    %44 = vector.extract_strided_slice %39 {offsets = [0, 96], sizes = [1, 32], strides = [1, 1]} : vector<1x128xf32> to vector<1x32xf32>
    %45 = arith.mulf %42, %28 : vector<1x32xf32>
    %46 = arith.mulf %41, %43 : vector<1x32xf32>
    %47 = arith.addf %45, %46 : vector<1x32xf32>
    %48 = math.tanh %47 : vector<1x32xf32>
    %49 = arith.mulf %44, %48 : vector<1x32xf32>
    %50 = arith.truncf %49 : vector<1x32xf32> to vector<1x32xbf16>
    %51 = vector.extract_strided_slice %10 {offsets = [2, 0], sizes = [1, 128], strides = [1, 1]} : vector<8x128xf32> to vector<1x128xf32>
    %cst_12 = arith.constant dense<0.000000e+00> : vector<1x128xf32>
    %52 = tpu.matmul %50, %5, %cst_12 {dimension_numbers = #tpu.dot_dimension_numbers<[1], [0], [0], [1], [0, 0, 1, 1], [], []>} : vector<1x32xbf16>, vector<32x128xbf16>, vector<1x128xf32> -> vector<1x128xf32>
    %53 = arith.addf %51, %52 : vector<1x128xf32>
    %54 = arith.negf %53 : vector<1x128xf32>
    %55 = math.exp %54 : vector<1x128xf32>
    %cst_13 = arith.constant 1.000000e+00 : f32
    %56 = vector.broadcast %cst_13 : f32 to vector<1x128xf32>
    %57 = arith.addf %56, %55 : vector<1x128xf32>
    %58 = arith.divf %56, %57 : vector<1x128xf32>
    %59 = math.tanh %53 : vector<1x128xf32>
    %60 = vector.extract_strided_slice %58 {offsets = [0, 0], sizes = [1, 32], strides = [1, 1]} : vector<1x128xf32> to vector<1x32xf32>
    %61 = vector.extract_strided_slice %58 {offsets = [0, 32], sizes = [1, 32], strides = [1, 1]} : vector<1x128xf32> to vector<1x32xf32>
    %62 = vector.extract_strided_slice %59 {offsets = [0, 64], sizes = [1, 32], strides = [1, 1]} : vector<1x128xf32> to vector<1x32xf32>
    %63 = vector.extract_strided_slice %58 {offsets = [0, 96], sizes = [1, 32], strides = [1, 1]} : vector<1x128xf32> to vector<1x32xf32>
    %64 = arith.mulf %61, %47 : vector<1x32xf32>
    %65 = arith.mulf %60, %62 : vector<1x32xf32>
    %66 = arith.addf %64, %65 : vector<1x32xf32>
    %67 = math.tanh %66 : vector<1x32xf32>
    %68 = arith.mulf %63, %67 : vector<1x32xf32>
    %69 = arith.truncf %68 : vector<1x32xf32> to vector<1x32xbf16>
    %70 = vector.extract_strided_slice %10 {offsets = [3, 0], sizes = [1, 128], strides = [1, 1]} : vector<8x128xf32> to vector<1x128xf32>
    %cst_14 = arith.constant dense<0.000000e+00> : vector<1x128xf32>
    %71 = tpu.matmul %69, %5, %cst_14 {dimension_numbers = #tpu.dot_dimension_numbers<[1], [0], [0], [1], [0, 0, 1, 1], [], []>} : vector<1x32xbf16>, vector<32x128xbf16>, vector<1x128xf32> -> vector<1x128xf32>
    %72 = arith.addf %70, %71 : vector<1x128xf32>
    %73 = arith.negf %72 : vector<1x128xf32>
    %74 = math.exp %73 : vector<1x128xf32>
    %cst_15 = arith.constant 1.000000e+00 : f32
    %75 = vector.broadcast %cst_15 : f32 to vector<1x128xf32>
    %76 = arith.addf %75, %74 : vector<1x128xf32>
    %77 = arith.divf %75, %76 : vector<1x128xf32>
    %78 = math.tanh %72 : vector<1x128xf32>
    %79 = vector.extract_strided_slice %77 {offsets = [0, 0], sizes = [1, 32], strides = [1, 1]} : vector<1x128xf32> to vector<1x32xf32>
    %80 = vector.extract_strided_slice %77 {offsets = [0, 32], sizes = [1, 32], strides = [1, 1]} : vector<1x128xf32> to vector<1x32xf32>
    %81 = vector.extract_strided_slice %78 {offsets = [0, 64], sizes = [1, 32], strides = [1, 1]} : vector<1x128xf32> to vector<1x32xf32>
    %82 = vector.extract_strided_slice %77 {offsets = [0, 96], sizes = [1, 32], strides = [1, 1]} : vector<1x128xf32> to vector<1x32xf32>
    %83 = arith.mulf %80, %66 : vector<1x32xf32>
    %84 = arith.mulf %79, %81 : vector<1x32xf32>
    %85 = arith.addf %83, %84 : vector<1x32xf32>
    %86 = math.tanh %85 : vector<1x32xf32>
    %87 = arith.mulf %82, %86 : vector<1x32xf32>
    %88 = arith.truncf %87 : vector<1x32xf32> to vector<1x32xbf16>
    %89 = vector.extract_strided_slice %10 {offsets = [4, 0], sizes = [1, 128], strides = [1, 1]} : vector<8x128xf32> to vector<1x128xf32>
    %cst_16 = arith.constant dense<0.000000e+00> : vector<1x128xf32>
    %90 = tpu.matmul %88, %5, %cst_16 {dimension_numbers = #tpu.dot_dimension_numbers<[1], [0], [0], [1], [0, 0, 1, 1], [], []>} : vector<1x32xbf16>, vector<32x128xbf16>, vector<1x128xf32> -> vector<1x128xf32>
    %91 = arith.addf %89, %90 : vector<1x128xf32>
    %92 = arith.negf %91 : vector<1x128xf32>
    %93 = math.exp %92 : vector<1x128xf32>
    %cst_17 = arith.constant 1.000000e+00 : f32
    %94 = vector.broadcast %cst_17 : f32 to vector<1x128xf32>
    %95 = arith.addf %94, %93 : vector<1x128xf32>
    %96 = arith.divf %94, %95 : vector<1x128xf32>
    %97 = math.tanh %91 : vector<1x128xf32>
    %98 = vector.extract_strided_slice %96 {offsets = [0, 0], sizes = [1, 32], strides = [1, 1]} : vector<1x128xf32> to vector<1x32xf32>
    %99 = vector.extract_strided_slice %96 {offsets = [0, 32], sizes = [1, 32], strides = [1, 1]} : vector<1x128xf32> to vector<1x32xf32>
    %100 = vector.extract_strided_slice %97 {offsets = [0, 64], sizes = [1, 32], strides = [1, 1]} : vector<1x128xf32> to vector<1x32xf32>
    %101 = vector.extract_strided_slice %96 {offsets = [0, 96], sizes = [1, 32], strides = [1, 1]} : vector<1x128xf32> to vector<1x32xf32>
    %102 = arith.mulf %99, %85 : vector<1x32xf32>
    %103 = arith.mulf %98, %100 : vector<1x32xf32>
    %104 = arith.addf %102, %103 : vector<1x32xf32>
    %105 = math.tanh %104 : vector<1x32xf32>
    %106 = arith.mulf %101, %105 : vector<1x32xf32>
    %107 = arith.truncf %106 : vector<1x32xf32> to vector<1x32xbf16>
    %108 = vector.extract_strided_slice %10 {offsets = [5, 0], sizes = [1, 128], strides = [1, 1]} : vector<8x128xf32> to vector<1x128xf32>
    %cst_18 = arith.constant dense<0.000000e+00> : vector<1x128xf32>
    %109 = tpu.matmul %107, %5, %cst_18 {dimension_numbers = #tpu.dot_dimension_numbers<[1], [0], [0], [1], [0, 0, 1, 1], [], []>} : vector<1x32xbf16>, vector<32x128xbf16>, vector<1x128xf32> -> vector<1x128xf32>
    %110 = arith.addf %108, %109 : vector<1x128xf32>
    %111 = arith.negf %110 : vector<1x128xf32>
    %112 = math.exp %111 : vector<1x128xf32>
    %cst_19 = arith.constant 1.000000e+00 : f32
    %113 = vector.broadcast %cst_19 : f32 to vector<1x128xf32>
    %114 = arith.addf %113, %112 : vector<1x128xf32>
    %115 = arith.divf %113, %114 : vector<1x128xf32>
    %116 = math.tanh %110 : vector<1x128xf32>
    %117 = vector.extract_strided_slice %115 {offsets = [0, 0], sizes = [1, 32], strides = [1, 1]} : vector<1x128xf32> to vector<1x32xf32>
    %118 = vector.extract_strided_slice %115 {offsets = [0, 32], sizes = [1, 32], strides = [1, 1]} : vector<1x128xf32> to vector<1x32xf32>
    %119 = vector.extract_strided_slice %116 {offsets = [0, 64], sizes = [1, 32], strides = [1, 1]} : vector<1x128xf32> to vector<1x32xf32>
    %120 = vector.extract_strided_slice %115 {offsets = [0, 96], sizes = [1, 32], strides = [1, 1]} : vector<1x128xf32> to vector<1x32xf32>
    %121 = arith.mulf %118, %104 : vector<1x32xf32>
    %122 = arith.mulf %117, %119 : vector<1x32xf32>
    %123 = arith.addf %121, %122 : vector<1x32xf32>
    %124 = math.tanh %123 : vector<1x32xf32>
    %125 = arith.mulf %120, %124 : vector<1x32xf32>
    %126 = arith.truncf %125 : vector<1x32xf32> to vector<1x32xbf16>
    %127 = vector.extract_strided_slice %10 {offsets = [6, 0], sizes = [1, 128], strides = [1, 1]} : vector<8x128xf32> to vector<1x128xf32>
    %cst_20 = arith.constant dense<0.000000e+00> : vector<1x128xf32>
    %128 = tpu.matmul %126, %5, %cst_20 {dimension_numbers = #tpu.dot_dimension_numbers<[1], [0], [0], [1], [0, 0, 1, 1], [], []>} : vector<1x32xbf16>, vector<32x128xbf16>, vector<1x128xf32> -> vector<1x128xf32>
    %129 = arith.addf %127, %128 : vector<1x128xf32>
    %130 = arith.negf %129 : vector<1x128xf32>
    %131 = math.exp %130 : vector<1x128xf32>
    %cst_21 = arith.constant 1.000000e+00 : f32
    %132 = vector.broadcast %cst_21 : f32 to vector<1x128xf32>
    %133 = arith.addf %132, %131 : vector<1x128xf32>
    %134 = arith.divf %132, %133 : vector<1x128xf32>
    %135 = math.tanh %129 : vector<1x128xf32>
    %136 = vector.extract_strided_slice %134 {offsets = [0, 0], sizes = [1, 32], strides = [1, 1]} : vector<1x128xf32> to vector<1x32xf32>
    %137 = vector.extract_strided_slice %134 {offsets = [0, 32], sizes = [1, 32], strides = [1, 1]} : vector<1x128xf32> to vector<1x32xf32>
    %138 = vector.extract_strided_slice %135 {offsets = [0, 64], sizes = [1, 32], strides = [1, 1]} : vector<1x128xf32> to vector<1x32xf32>
    %139 = vector.extract_strided_slice %134 {offsets = [0, 96], sizes = [1, 32], strides = [1, 1]} : vector<1x128xf32> to vector<1x32xf32>
    %140 = arith.mulf %137, %123 : vector<1x32xf32>
    %141 = arith.mulf %136, %138 : vector<1x32xf32>
    %142 = arith.addf %140, %141 : vector<1x32xf32>
    %143 = math.tanh %142 : vector<1x32xf32>
    %144 = arith.mulf %139, %143 : vector<1x32xf32>
    %145 = arith.truncf %144 : vector<1x32xf32> to vector<1x32xbf16>
    %146 = vector.extract_strided_slice %10 {offsets = [7, 0], sizes = [1, 128], strides = [1, 1]} : vector<8x128xf32> to vector<1x128xf32>
    %cst_22 = arith.constant dense<0.000000e+00> : vector<1x128xf32>
    %147 = tpu.matmul %145, %5, %cst_22 {dimension_numbers = #tpu.dot_dimension_numbers<[1], [0], [0], [1], [0, 0, 1, 1], [], []>} : vector<1x32xbf16>, vector<32x128xbf16>, vector<1x128xf32> -> vector<1x128xf32>
    %148 = arith.addf %146, %147 : vector<1x128xf32>
    %149 = arith.negf %148 : vector<1x128xf32>
    %150 = math.exp %149 : vector<1x128xf32>
    %cst_23 = arith.constant 1.000000e+00 : f32
    %151 = vector.broadcast %cst_23 : f32 to vector<1x128xf32>
    %152 = arith.addf %151, %150 : vector<1x128xf32>
    %153 = arith.divf %151, %152 : vector<1x128xf32>
    %154 = math.tanh %148 : vector<1x128xf32>
    %155 = vector.extract_strided_slice %153 {offsets = [0, 0], sizes = [1, 32], strides = [1, 1]} : vector<1x128xf32> to vector<1x32xf32>
    %156 = vector.extract_strided_slice %153 {offsets = [0, 32], sizes = [1, 32], strides = [1, 1]} : vector<1x128xf32> to vector<1x32xf32>
    %157 = vector.extract_strided_slice %154 {offsets = [0, 64], sizes = [1, 32], strides = [1, 1]} : vector<1x128xf32> to vector<1x32xf32>
    %158 = vector.extract_strided_slice %153 {offsets = [0, 96], sizes = [1, 32], strides = [1, 1]} : vector<1x128xf32> to vector<1x32xf32>
    %159 = arith.mulf %156, %142 : vector<1x32xf32>
    %160 = arith.mulf %155, %157 : vector<1x32xf32>
    %161 = arith.addf %159, %160 : vector<1x32xf32>
    %162 = math.tanh %161 : vector<1x32xf32>
    %163 = arith.mulf %158, %162 : vector<1x32xf32>
    %164 = tpu.concatenate %30, %49, %68, %87, %106, %125, %144, %163 in 0 : vector<1x32xf32>, vector<1x32xf32>, vector<1x32xf32>, vector<1x32xf32>, vector<1x32xf32>, vector<1x32xf32>, vector<1x32xf32>, vector<1x32xf32> -> vector<8x32xf32>
    %c1 = arith.constant 1 : index
    %c0_24 = arith.constant 0 : index
    %c0_25 = arith.constant 0 : index
    %165 = vector.load %arg1[%c1, %c0_24, %c0_25] : memref<2x64x128xbf16, #tpu.memory_space<vmem>>, vector<1x64x128xbf16>
    %166 = vector.shape_cast %165 : vector<1x64x128xbf16> to vector<64x128xbf16>
    %167 = vector.extract_strided_slice %166 {offsets = [0, 0], sizes = [32, 128], strides = [1, 1]} : vector<64x128xbf16> to vector<32x128xbf16>
    %168 = vector.extract_strided_slice %166 {offsets = [32, 0], sizes = [32, 128], strides = [1, 1]} : vector<64x128xbf16> to vector<32x128xbf16>
    %169 = vector.extract_strided_slice %0 {offsets = [1, 0], sizes = [1, 128], strides = [1, 1]} : vector<3x128xf32> to vector<1x128xf32>
    %170 = arith.truncf %164 : vector<8x32xf32> to vector<8x32xbf16>
    %cst_26 = arith.constant dense<0.000000e+00> : vector<8x128xf32>
    %171 = tpu.matmul %170, %167, %cst_26 {dimension_numbers = #tpu.dot_dimension_numbers<[1], [0], [0], [1], [0, 0, 1, 1], [], []>} : vector<8x32xbf16>, vector<32x128xbf16>, vector<8x128xf32> -> vector<8x128xf32>
    %172 = vector.broadcast %169 : vector<1x128xf32> to vector<8x128xf32>
    %173 = arith.addf %171, %172 : vector<8x128xf32>
    %cst_27 = arith.constant 0.000000e+00 : bf16
    %174 = vector.broadcast %cst_27 : bf16 to vector<1x32xbf16>
    %cst_28 = arith.constant 0.000000e+00 : f32
    %175 = vector.broadcast %cst_28 : f32 to vector<1x32xf32>
    %176 = vector.extract_strided_slice %173 {offsets = [0, 0], sizes = [1, 128], strides = [1, 1]} : vector<8x128xf32> to vector<1x128xf32>
    %cst_29 = arith.constant dense<0.000000e+00> : vector<1x128xf32>
    %177 = tpu.matmul %174, %168, %cst_29 {dimension_numbers = #tpu.dot_dimension_numbers<[1], [0], [0], [1], [0, 0, 1, 1], [], []>} : vector<1x32xbf16>, vector<32x128xbf16>, vector<1x128xf32> -> vector<1x128xf32>
    %178 = arith.addf %176, %177 : vector<1x128xf32>
    %179 = arith.negf %178 : vector<1x128xf32>
    %180 = math.exp %179 : vector<1x128xf32>
    %cst_30 = arith.constant 1.000000e+00 : f32
    %181 = vector.broadcast %cst_30 : f32 to vector<1x128xf32>
    %182 = arith.addf %181, %180 : vector<1x128xf32>
    %183 = arith.divf %181, %182 : vector<1x128xf32>
    %184 = math.tanh %178 : vector<1x128xf32>
    %185 = vector.extract_strided_slice %183 {offsets = [0, 0], sizes = [1, 32], strides = [1, 1]} : vector<1x128xf32> to vector<1x32xf32>
    %186 = vector.extract_strided_slice %183 {offsets = [0, 32], sizes = [1, 32], strides = [1, 1]} : vector<1x128xf32> to vector<1x32xf32>
    %187 = vector.extract_strided_slice %184 {offsets = [0, 64], sizes = [1, 32], strides = [1, 1]} : vector<1x128xf32> to vector<1x32xf32>
    %188 = vector.extract_strided_slice %183 {offsets = [0, 96], sizes = [1, 32], strides = [1, 1]} : vector<1x128xf32> to vector<1x32xf32>
    %189 = arith.mulf %186, %175 : vector<1x32xf32>
    %190 = arith.mulf %185, %187 : vector<1x32xf32>
    %191 = arith.addf %189, %190 : vector<1x32xf32>
    %192 = math.tanh %191 : vector<1x32xf32>
    %193 = arith.mulf %188, %192 : vector<1x32xf32>
    %194 = arith.truncf %193 : vector<1x32xf32> to vector<1x32xbf16>
    %195 = vector.extract_strided_slice %173 {offsets = [1, 0], sizes = [1, 128], strides = [1, 1]} : vector<8x128xf32> to vector<1x128xf32>
    %cst_31 = arith.constant dense<0.000000e+00> : vector<1x128xf32>
    %196 = tpu.matmul %194, %168, %cst_31 {dimension_numbers = #tpu.dot_dimension_numbers<[1], [0], [0], [1], [0, 0, 1, 1], [], []>} : vector<1x32xbf16>, vector<32x128xbf16>, vector<1x128xf32> -> vector<1x128xf32>
    %197 = arith.addf %195, %196 : vector<1x128xf32>
    %198 = arith.negf %197 : vector<1x128xf32>
    %199 = math.exp %198 : vector<1x128xf32>
    %cst_32 = arith.constant 1.000000e+00 : f32
    %200 = vector.broadcast %cst_32 : f32 to vector<1x128xf32>
    %201 = arith.addf %200, %199 : vector<1x128xf32>
    %202 = arith.divf %200, %201 : vector<1x128xf32>
    %203 = math.tanh %197 : vector<1x128xf32>
    %204 = vector.extract_strided_slice %202 {offsets = [0, 0], sizes = [1, 32], strides = [1, 1]} : vector<1x128xf32> to vector<1x32xf32>
    %205 = vector.extract_strided_slice %202 {offsets = [0, 32], sizes = [1, 32], strides = [1, 1]} : vector<1x128xf32> to vector<1x32xf32>
    %206 = vector.extract_strided_slice %203 {offsets = [0, 64], sizes = [1, 32], strides = [1, 1]} : vector<1x128xf32> to vector<1x32xf32>
    %207 = vector.extract_strided_slice %202 {offsets = [0, 96], sizes = [1, 32], strides = [1, 1]} : vector<1x128xf32> to vector<1x32xf32>
    %208 = arith.mulf %205, %191 : vector<1x32xf32>
    %209 = arith.mulf %204, %206 : vector<1x32xf32>
    %210 = arith.addf %208, %209 : vector<1x32xf32>
    %211 = math.tanh %210 : vector<1x32xf32>
    %212 = arith.mulf %207, %211 : vector<1x32xf32>
    %213 = arith.truncf %212 : vector<1x32xf32> to vector<1x32xbf16>
    %214 = vector.extract_strided_slice %173 {offsets = [2, 0], sizes = [1, 128], strides = [1, 1]} : vector<8x128xf32> to vector<1x128xf32>
    %cst_33 = arith.constant dense<0.000000e+00> : vector<1x128xf32>
    %215 = tpu.matmul %213, %168, %cst_33 {dimension_numbers = #tpu.dot_dimension_numbers<[1], [0], [0], [1], [0, 0, 1, 1], [], []>} : vector<1x32xbf16>, vector<32x128xbf16>, vector<1x128xf32> -> vector<1x128xf32>
    %216 = arith.addf %214, %215 : vector<1x128xf32>
    %217 = arith.negf %216 : vector<1x128xf32>
    %218 = math.exp %217 : vector<1x128xf32>
    %cst_34 = arith.constant 1.000000e+00 : f32
    %219 = vector.broadcast %cst_34 : f32 to vector<1x128xf32>
    %220 = arith.addf %219, %218 : vector<1x128xf32>
    %221 = arith.divf %219, %220 : vector<1x128xf32>
    %222 = math.tanh %216 : vector<1x128xf32>
    %223 = vector.extract_strided_slice %221 {offsets = [0, 0], sizes = [1, 32], strides = [1, 1]} : vector<1x128xf32> to vector<1x32xf32>
    %224 = vector.extract_strided_slice %221 {offsets = [0, 32], sizes = [1, 32], strides = [1, 1]} : vector<1x128xf32> to vector<1x32xf32>
    %225 = vector.extract_strided_slice %222 {offsets = [0, 64], sizes = [1, 32], strides = [1, 1]} : vector<1x128xf32> to vector<1x32xf32>
    %226 = vector.extract_strided_slice %221 {offsets = [0, 96], sizes = [1, 32], strides = [1, 1]} : vector<1x128xf32> to vector<1x32xf32>
    %227 = arith.mulf %224, %210 : vector<1x32xf32>
    %228 = arith.mulf %223, %225 : vector<1x32xf32>
    %229 = arith.addf %227, %228 : vector<1x32xf32>
    %230 = math.tanh %229 : vector<1x32xf32>
    %231 = arith.mulf %226, %230 : vector<1x32xf32>
    %232 = arith.truncf %231 : vector<1x32xf32> to vector<1x32xbf16>
    %233 = vector.extract_strided_slice %173 {offsets = [3, 0], sizes = [1, 128], strides = [1, 1]} : vector<8x128xf32> to vector<1x128xf32>
    %cst_35 = arith.constant dense<0.000000e+00> : vector<1x128xf32>
    %234 = tpu.matmul %232, %168, %cst_35 {dimension_numbers = #tpu.dot_dimension_numbers<[1], [0], [0], [1], [0, 0, 1, 1], [], []>} : vector<1x32xbf16>, vector<32x128xbf16>, vector<1x128xf32> -> vector<1x128xf32>
    %235 = arith.addf %233, %234 : vector<1x128xf32>
    %236 = arith.negf %235 : vector<1x128xf32>
    %237 = math.exp %236 : vector<1x128xf32>
    %cst_36 = arith.constant 1.000000e+00 : f32
    %238 = vector.broadcast %cst_36 : f32 to vector<1x128xf32>
    %239 = arith.addf %238, %237 : vector<1x128xf32>
    %240 = arith.divf %238, %239 : vector<1x128xf32>
    %241 = math.tanh %235 : vector<1x128xf32>
    %242 = vector.extract_strided_slice %240 {offsets = [0, 0], sizes = [1, 32], strides = [1, 1]} : vector<1x128xf32> to vector<1x32xf32>
    %243 = vector.extract_strided_slice %240 {offsets = [0, 32], sizes = [1, 32], strides = [1, 1]} : vector<1x128xf32> to vector<1x32xf32>
    %244 = vector.extract_strided_slice %241 {offsets = [0, 64], sizes = [1, 32], strides = [1, 1]} : vector<1x128xf32> to vector<1x32xf32>
    %245 = vector.extract_strided_slice %240 {offsets = [0, 96], sizes = [1, 32], strides = [1, 1]} : vector<1x128xf32> to vector<1x32xf32>
    %246 = arith.mulf %243, %229 : vector<1x32xf32>
    %247 = arith.mulf %242, %244 : vector<1x32xf32>
    %248 = arith.addf %246, %247 : vector<1x32xf32>
    %249 = math.tanh %248 : vector<1x32xf32>
    %250 = arith.mulf %245, %249 : vector<1x32xf32>
    %251 = arith.truncf %250 : vector<1x32xf32> to vector<1x32xbf16>
    %252 = vector.extract_strided_slice %173 {offsets = [4, 0], sizes = [1, 128], strides = [1, 1]} : vector<8x128xf32> to vector<1x128xf32>
    %cst_37 = arith.constant dense<0.000000e+00> : vector<1x128xf32>
    %253 = tpu.matmul %251, %168, %cst_37 {dimension_numbers = #tpu.dot_dimension_numbers<[1], [0], [0], [1], [0, 0, 1, 1], [], []>} : vector<1x32xbf16>, vector<32x128xbf16>, vector<1x128xf32> -> vector<1x128xf32>
    %254 = arith.addf %252, %253 : vector<1x128xf32>
    %255 = arith.negf %254 : vector<1x128xf32>
    %256 = math.exp %255 : vector<1x128xf32>
    %cst_38 = arith.constant 1.000000e+00 : f32
    %257 = vector.broadcast %cst_38 : f32 to vector<1x128xf32>
    %258 = arith.addf %257, %256 : vector<1x128xf32>
    %259 = arith.divf %257, %258 : vector<1x128xf32>
    %260 = math.tanh %254 : vector<1x128xf32>
    %261 = vector.extract_strided_slice %259 {offsets = [0, 0], sizes = [1, 32], strides = [1, 1]} : vector<1x128xf32> to vector<1x32xf32>
    %262 = vector.extract_strided_slice %259 {offsets = [0, 32], sizes = [1, 32], strides = [1, 1]} : vector<1x128xf32> to vector<1x32xf32>
    %263 = vector.extract_strided_slice %260 {offsets = [0, 64], sizes = [1, 32], strides = [1, 1]} : vector<1x128xf32> to vector<1x32xf32>
    %264 = vector.extract_strided_slice %259 {offsets = [0, 96], sizes = [1, 32], strides = [1, 1]} : vector<1x128xf32> to vector<1x32xf32>
    %265 = arith.mulf %262, %248 : vector<1x32xf32>
    %266 = arith.mulf %261, %263 : vector<1x32xf32>
    %267 = arith.addf %265, %266 : vector<1x32xf32>
    %268 = math.tanh %267 : vector<1x32xf32>
    %269 = arith.mulf %264, %268 : vector<1x32xf32>
    %270 = arith.truncf %269 : vector<1x32xf32> to vector<1x32xbf16>
    %271 = vector.extract_strided_slice %173 {offsets = [5, 0], sizes = [1, 128], strides = [1, 1]} : vector<8x128xf32> to vector<1x128xf32>
    %cst_39 = arith.constant dense<0.000000e+00> : vector<1x128xf32>
    %272 = tpu.matmul %270, %168, %cst_39 {dimension_numbers = #tpu.dot_dimension_numbers<[1], [0], [0], [1], [0, 0, 1, 1], [], []>} : vector<1x32xbf16>, vector<32x128xbf16>, vector<1x128xf32> -> vector<1x128xf32>
    %273 = arith.addf %271, %272 : vector<1x128xf32>
    %274 = arith.negf %273 : vector<1x128xf32>
    %275 = math.exp %274 : vector<1x128xf32>
    %cst_40 = arith.constant 1.000000e+00 : f32
    %276 = vector.broadcast %cst_40 : f32 to vector<1x128xf32>
    %277 = arith.addf %276, %275 : vector<1x128xf32>
    %278 = arith.divf %276, %277 : vector<1x128xf32>
    %279 = math.tanh %273 : vector<1x128xf32>
    %280 = vector.extract_strided_slice %278 {offsets = [0, 0], sizes = [1, 32], strides = [1, 1]} : vector<1x128xf32> to vector<1x32xf32>
    %281 = vector.extract_strided_slice %278 {offsets = [0, 32], sizes = [1, 32], strides = [1, 1]} : vector<1x128xf32> to vector<1x32xf32>
    %282 = vector.extract_strided_slice %279 {offsets = [0, 64], sizes = [1, 32], strides = [1, 1]} : vector<1x128xf32> to vector<1x32xf32>
    %283 = vector.extract_strided_slice %278 {offsets = [0, 96], sizes = [1, 32], strides = [1, 1]} : vector<1x128xf32> to vector<1x32xf32>
    %284 = arith.mulf %281, %267 : vector<1x32xf32>
    %285 = arith.mulf %280, %282 : vector<1x32xf32>
    %286 = arith.addf %284, %285 : vector<1x32xf32>
    %287 = math.tanh %286 : vector<1x32xf32>
    %288 = arith.mulf %283, %287 : vector<1x32xf32>
    %289 = arith.truncf %288 : vector<1x32xf32> to vector<1x32xbf16>
    %290 = vector.extract_strided_slice %173 {offsets = [6, 0], sizes = [1, 128], strides = [1, 1]} : vector<8x128xf32> to vector<1x128xf32>
    %cst_41 = arith.constant dense<0.000000e+00> : vector<1x128xf32>
    %291 = tpu.matmul %289, %168, %cst_41 {dimension_numbers = #tpu.dot_dimension_numbers<[1], [0], [0], [1], [0, 0, 1, 1], [], []>} : vector<1x32xbf16>, vector<32x128xbf16>, vector<1x128xf32> -> vector<1x128xf32>
    %292 = arith.addf %290, %291 : vector<1x128xf32>
    %293 = arith.negf %292 : vector<1x128xf32>
    %294 = math.exp %293 : vector<1x128xf32>
    %cst_42 = arith.constant 1.000000e+00 : f32
    %295 = vector.broadcast %cst_42 : f32 to vector<1x128xf32>
    %296 = arith.addf %295, %294 : vector<1x128xf32>
    %297 = arith.divf %295, %296 : vector<1x128xf32>
    %298 = math.tanh %292 : vector<1x128xf32>
    %299 = vector.extract_strided_slice %297 {offsets = [0, 0], sizes = [1, 32], strides = [1, 1]} : vector<1x128xf32> to vector<1x32xf32>
    %300 = vector.extract_strided_slice %297 {offsets = [0, 32], sizes = [1, 32], strides = [1, 1]} : vector<1x128xf32> to vector<1x32xf32>
    %301 = vector.extract_strided_slice %298 {offsets = [0, 64], sizes = [1, 32], strides = [1, 1]} : vector<1x128xf32> to vector<1x32xf32>
    %302 = vector.extract_strided_slice %297 {offsets = [0, 96], sizes = [1, 32], strides = [1, 1]} : vector<1x128xf32> to vector<1x32xf32>
    %303 = arith.mulf %300, %286 : vector<1x32xf32>
    %304 = arith.mulf %299, %301 : vector<1x32xf32>
    %305 = arith.addf %303, %304 : vector<1x32xf32>
    %306 = math.tanh %305 : vector<1x32xf32>
    %307 = arith.mulf %302, %306 : vector<1x32xf32>
    %308 = arith.truncf %307 : vector<1x32xf32> to vector<1x32xbf16>
    %309 = vector.extract_strided_slice %173 {offsets = [7, 0], sizes = [1, 128], strides = [1, 1]} : vector<8x128xf32> to vector<1x128xf32>
    %cst_43 = arith.constant dense<0.000000e+00> : vector<1x128xf32>
    %310 = tpu.matmul %308, %168, %cst_43 {dimension_numbers = #tpu.dot_dimension_numbers<[1], [0], [0], [1], [0, 0, 1, 1], [], []>} : vector<1x32xbf16>, vector<32x128xbf16>, vector<1x128xf32> -> vector<1x128xf32>
    %311 = arith.addf %309, %310 : vector<1x128xf32>
    %312 = arith.negf %311 : vector<1x128xf32>
    %313 = math.exp %312 : vector<1x128xf32>
    %cst_44 = arith.constant 1.000000e+00 : f32
    %314 = vector.broadcast %cst_44 : f32 to vector<1x128xf32>
    %315 = arith.addf %314, %313 : vector<1x128xf32>
    %316 = arith.divf %314, %315 : vector<1x128xf32>
    %317 = math.tanh %311 : vector<1x128xf32>
    %318 = vector.extract_strided_slice %316 {offsets = [0, 0], sizes = [1, 32], strides = [1, 1]} : vector<1x128xf32> to vector<1x32xf32>
    %319 = vector.extract_strided_slice %316 {offsets = [0, 32], sizes = [1, 32], strides = [1, 1]} : vector<1x128xf32> to vector<1x32xf32>
    %320 = vector.extract_strided_slice %317 {offsets = [0, 64], sizes = [1, 32], strides = [1, 1]} : vector<1x128xf32> to vector<1x32xf32>
    %321 = vector.extract_strided_slice %316 {offsets = [0, 96], sizes = [1, 32], strides = [1, 1]} : vector<1x128xf32> to vector<1x32xf32>
    %322 = arith.mulf %319, %305 : vector<1x32xf32>
    %323 = arith.mulf %318, %320 : vector<1x32xf32>
    %324 = arith.addf %322, %323 : vector<1x32xf32>
    %325 = math.tanh %324 : vector<1x32xf32>
    %326 = arith.mulf %321, %325 : vector<1x32xf32>
    %327 = vector.extract_strided_slice %0 {offsets = [2, 0], sizes = [1, 32], strides = [1, 1]} : vector<3x128xf32> to vector<1x32xf32>
    %328 = vector.extract_strided_slice %0 {offsets = [2, 32], sizes = [1, 1], strides = [1, 1]} : vector<3x128xf32> to vector<1x1xf32>
    %329 = arith.mulf %269, %327 : vector<1x32xf32>
    %cst_45 = arith.constant dense<0.000000e+00> : vector<1xf32>
    %330 = vector.multi_reduction <add>, %329, %cst_45 [1] : vector<1x32xf32> to vector<1xf32>
    %331 = vector.shape_cast %330 : vector<1xf32> to vector<1x1xf32>
    %332 = arith.mulf %288, %327 : vector<1x32xf32>
    %cst_46 = arith.constant dense<0.000000e+00> : vector<1xf32>
    %333 = vector.multi_reduction <add>, %332, %cst_46 [1] : vector<1x32xf32> to vector<1xf32>
    %334 = vector.shape_cast %333 : vector<1xf32> to vector<1x1xf32>
    %335 = arith.mulf %307, %327 : vector<1x32xf32>
    %cst_47 = arith.constant dense<0.000000e+00> : vector<1xf32>
    %336 = vector.multi_reduction <add>, %335, %cst_47 [1] : vector<1x32xf32> to vector<1xf32>
    %337 = vector.shape_cast %336 : vector<1xf32> to vector<1x1xf32>
    %338 = arith.mulf %326, %327 : vector<1x32xf32>
    %cst_48 = arith.constant dense<0.000000e+00> : vector<1xf32>
    %339 = vector.multi_reduction <add>, %338, %cst_48 [1] : vector<1x32xf32> to vector<1xf32>
    %340 = vector.shape_cast %339 : vector<1xf32> to vector<1x1xf32>
    %341 = tpu.concatenate %331, %334, %337, %340 in 1 : vector<1x1xf32>, vector<1x1xf32>, vector<1x1xf32>, vector<1x1xf32> -> vector<1x4xf32>
    %342 = vector.broadcast %328 : vector<1x1xf32> to vector<1x4xf32>
    %343 = arith.addf %341, %342 : vector<1x4xf32>
    %cst_49 = arith.constant 0.000000e+00 : f32
    %344 = vector.broadcast %cst_49 : f32 to vector<1x4xf32>
    %345 = arith.maximumf %343, %344 : vector<1x4xf32>
    %c0_50 = arith.constant 0 : index
    %c0_51 = arith.constant 0 : index
    %346 = vector.load %arg3[%c0_50, %c0_51] : memref<1x4xf32, #tpu.memory_space<vmem>>, vector<1x4xf32>
    tpu.vector_store %arg3[%c0_50, %c0_51], %345 {strides = array<i32>} : memref<1x4xf32, #tpu.memory_space<vmem>>, vector<1x4xf32>,
    return
  }
}

</mosaic_0001>

<llo_original>
// kernel: tpu_custom_call.1
$region0: #{tpu_custom_call.1}
  #allocation0 [shape = 'u32[]', space=smem, size = 0x4, offset = 0x4, fixed_abs, tag = 'smem constant byte address 0x4 - core index']
  #allocation1 [shape = 'u32[72,128]{1,0:T(1,128)}', space=vmem, size = 0x9000, scoped, tag = 'internal scratch']
  %s0 = inlined_call_operand.hbm [shape: f32[8,32], index: 0, kind: input, shape index: {}]
  %s1 = inlined_call_operand.hbm [shape: bf16[2,64,128], index: 1, kind: input, shape index: {}]
  %s2 = inlined_call_operand.hbm [shape: f32[3,128], index: 2, kind: input, shape index: {}]
  %s3 = inlined_call_operand.hbm [shape: f32[1,4], index: 3, kind: output, shape index: {}]
  %s4 = sld [smem:[#allocation0]]
  $region34: #{tpu_custom_call.1} parent=0
    _
  %s6 = ssub.s32 1, %s4
  %s7 = scalar_select 0, %s6, %s4
  $region1: #{tpu_custom_call.1} parent=0
    #allocation2 [shape = 'u8[4096]{0}', space=vmem, size = 0x1000, scoped, tag = 'input window, operand 0, single buffered']
    #allocation3 [shape = 's32[1]{0}', space=sflag, size = 0x4, scoped, tag = 'scoped memory for tpu_custom_call.1']
    #allocation4 [shape = 's32[1]{0}', space=sflag, size = 0x4, scoped, tag = 'scoped memory for tpu_custom_call.1']
    #allocation5 [shape = 'u8[32768]{0}', space=vmem, size = 0x8000, scoped, tag = 'input window, operand 1, single buffered']
    #allocation6 [shape = 's32[1]{0}', space=sflag, size = 0x4, scoped, tag = 'scoped memory for tpu_custom_call.1']
    #allocation7 [shape = 'u8[2048]{0}', space=vmem, size = 0x800, scoped, tag = 'input window, operand 2, single buffered']
    #allocation8 [shape = 'u8[512]{0}', space=vmem, size = 0x400, scoped, tag = 'output window, operand 0, single buffered']
    %8 = vsyncpa [#allocation3], 0
    %9 = vsyncpa [#allocation6], 0
    %10 = vsyncpa [#allocation4], 0
    // Predicated region
    $region2: #{tpu_custom_call.1} parent=1 // pred_check
      _
    $region3: #{tpu_custom_call.1} parent=1 // pred_check_branch
      %12 = sbr.rel (0) target = $region5
    $region4: #{tpu_custom_call.1} parent=1 // pred_region
      %14 = vsyncadd [#allocation3], 0
      %s16 = sshll.u32 %s0, 4
      %s17 = int_to_ptr.hbm [resolvable:$true] %s16
      %s18 = sshll.u32 [#allocation2], 4
      %s19 = int_to_ptr.vmem [resolvable:$true] %s18
      %21 = dma.hbm_to_vmem [thread:$0]  %s17, 128, %s19, [#allocation3]
    $region5: #{tpu_custom_call.1} parent=1 // pred_fallthru
      _
    // Predicated region
    $region6: #{tpu_custom_call.1} parent=1 // pred_check
      _
    $region7: #{tpu_custom_call.1} parent=1 // pred_check_branch
      %23 = sbr.rel (0) target = $region9
    $region8: #{tpu_custom_call.1} parent=1 // pred_region
      %25 = vsyncadd [#allocation6], 0
      %s26 = sshll.u32 %s1, 4
      %s27 = int_to_ptr.hbm [resolvable:$true] %s26
      %s28 = sshll.u32 [#allocation5], 4
      %s29 = int_to_ptr.vmem [resolvable:$true] %s28
      %34 = dma.hbm_to_vmem [thread:$0]  %s27, 1024, %s29, [#allocation6], 64, 64, 4
    $region9: #{tpu_custom_call.1} parent=1 // pred_fallthru
      _
    // Predicated region
    $region10: #{tpu_custom_call.1} parent=1 // pred_check
      _
    $region11: #{tpu_custom_call.1} parent=1 // pred_check_branch
      %36 = sbr.rel (0) target = $region13
    $region12: #{tpu_custom_call.1} parent=1 // pred_region
      %38 = vsyncadd [#allocation6], 0
      %s40 = sshll.u32 %s2, 4
      %s41 = int_to_ptr.hbm [resolvable:$true] %s40
      %s42 = sshll.u32 [#allocation7], 4
      %s43 = int_to_ptr.vmem [resolvable:$true] %s42
      %45 = dma.hbm_to_vmem [thread:$0]  %s41, 64, %s43, [#allocation6]
    $region13: #{tpu_custom_call.1} parent=1 // pred_fallthru
      _
    // Predicated region
    $region14: #{tpu_custom_call.1} parent=1 // pred_check
      _
    $region15: #{tpu_custom_call.1} parent=1 // pred_check_branch
      %47 = sbr.rel (0) target = $region17
    $region16: #{tpu_custom_call.1} parent=1 // pred_region
      %49 = dma.done [#allocation3], 128
    $region17: #{tpu_custom_call.1} parent=1 // pred_fallthru
      _
    // Predicated region
    $region18: #{tpu_custom_call.1} parent=1 // pred_check
      _
    $region19: #{tpu_custom_call.1} parent=1 // pred_check_branch
      %51 = sbr.rel (0) target = $region21
    $region20: #{tpu_custom_call.1} parent=1 // pred_region
      %53 = dma.done [#allocation6], 1024
    $region21: #{tpu_custom_call.1} parent=1 // pred_fallthru
      _
    // Predicated region
    $region22: #{tpu_custom_call.1} parent=1 // pred_check
      _
    $region23: #{tpu_custom_call.1} parent=1 // pred_check_branch
      %55 = sbr.rel (0) target = $region25
    $region24: #{tpu_custom_call.1} parent=1 // pred_region
      %57 = dma.done [#allocation6], 64
    $region25: #{tpu_custom_call.1} parent=1 // pred_fallthru
      _
    %v59 = vld [vmem:[#allocation7] sm:$0x7]
    %v60 = vld [vmem:[#allocation2] sm:$0xff]
    %v61 = vld [vmem:[#allocation5] sm:$0xf]
    %v62 = vld [vmem:[#allocation5 + $0x4] sm:$0xf]
    %v63 = vld [vmem:[#allocation5 + $0x8] sm:$0xf]
    %v64 = vld [vmem:[#allocation5 + $0xc] sm:$0xf]
    %v65 = vld [vmem:[#allocation5 + $0x10] sm:$0xf]
    %v66 = vld [vmem:[#allocation5 + $0x14] sm:$0xf]
    %v67 = vld [vmem:[#allocation5 + $0x18] sm:$0xf]
    %v68 = vld [vmem:[#allocation5 + $0x1c] sm:$0xf]
    %v69 = vpack.c.bf16 %v60, %v60
    %v70 = vperm.slane %v59, 0
    %v75 = vunpack.c.l.b16 %v61
    %v76 = vunpack.c.l.b16 %v62
    %v77 = vunpack.c.l.b16 %v63
    %v78 = vunpack.c.l.b16 %v64
    %v79 = vpack.c.b16 %v76, %v75
    %v80 = vpack.c.b16 %v78, %v77
    %vm83 = vcmask 261120
    %v85 = vsel %vm83, %v69, 0
    %87 = vmatpush.bf16.msra.mxu0 0
    %88 = vmatpush.bf16.msra.mxu0 0
    %89 = vmatpush.bf16.msra.mxu0 0
    %90 = vmatpush.bf16.msra.mxu0 0
    %91 = vmatpush.bf16.msra.mxu0 0
    %92 = vmatpush.bf16.msra.mxu0 0
    %93 = vmatpush.bf16.msra.mxu0 %v80
    %94 = vmatpush.bf16.msra.mxu0 %v79
    %95 = vmatmul.bf16.gmra.mxu0 %v85
    %v96 = vpop.f32.mrf.mxu0
    %v97 = vadd.f32 %v70, %v96
    %v98 = vpop.f32.mrf.mxu0
    %99 = vdwg.mxu0
    %v104 = vunpack.c.l.b16 %v65
    %v105 = vunpack.c.l.b16 %v66
    %v106 = vunpack.c.l.b16 %v67
    %v107 = vunpack.c.l.b16 %v68
    %v108 = vpack.c.b16 %v105, %v104
    %v109 = vpack.c.b16 %v107, %v106
    %v113 = vsel %vm83, 0, 0
    %115 = vmatpush.bf16.msra.mxu0 0
    %116 = vmatpush.bf16.msra.mxu0 0
    %117 = vmatpush.bf16.msra.mxu0 0
    %118 = vmatpush.bf16.msra.mxu0 0
    %119 = vmatpush.bf16.msra.mxu0 0
    %120 = vmatpush.bf16.msra.mxu0 0
    %121 = vmatpush.bf16.msra.mxu0 %v109
    %122 = vmatpush.bf16.msra.mxu0 %v108
    %123 = vmatmul.bf16.gmra.mxu0 %v113
    %v124 = vpop.f32.mrf.mxu0
    %v125 = vadd.f32 0.0, %v124
    %v126 = vpop.f32.mrf.mxu0
    %127 = vdwg.mxu0
    %v128 = vadd.f32 %v97, %v125
    %v129 = vxor.u32 %v128, 2147483648
    %v130 = vmul.f32 %v129, 1.442695
    %v131 = vpow.pop %v130
    %v132 = vadd.f32 %v131, 1.0
    %v133 = vrcp.pop %v132
    %v134 = vmul.f32 %v132, %v133
    %v135 = vsub.f32 1.0, %v134
    %v136 = vmul.f32 %v133, %v135
    %v137 = vadd.f32 %v133, %v136
    %vm138 = vweird.f32 %v132
    %vm139 = vweird.f32 %v133
    %vm140 = vmor %vm138, %vm139
    %v141 = vsel %vm140, %v133, %v137
    %v142 = vand.u32 2147483647, %v132
    %vm143 = vcmp.eq.f32.partialorder %v142, 8.507059e+37
    %v144 = vand.u32 %v132, 2147483648
    %v145 = vor.u32 1.1754944e-38, %v144
    %v146 = vsel %vm143, %v145, %v141
    %v147 = vmul.f32 1.0, %v146
    %v148 = vtanh.pop %v128
    %v149 = vmul.f32 %v147, 0.0
    %151 = vrot.lane.b32.xlu0 %v148, 64
    %v152 = vpop.permute.xlu0 %151
    %v154 = vmul.f32 %v147, %v152
    %156 = vrot.lane.b32.xlu0 %v154, 32
    %v157 = vpop.permute.xlu0 %156
    %v159 = vadd.f32 %v149, %v157
    %v160 = vtanh.pop %v159
    %162 = vrot.lane.b32.xlu0 %v160, 64
    %v163 = vpop.permute.xlu0 %162
    %v165 = vmul.f32 %v147, %v163
    %v166 = vpack.c.bf16 %v165, %v165
    %168 = vrot.lane.b32.xlu0 %v166, 32
    %v169 = vpop.permute.xlu0 %168
    %v171 = vsel %vm83, %v169, 0
    %173 = vmatpush.bf16.msra.mxu0 0
    %174 = vmatpush.bf16.msra.mxu0 0
    %175 = vmatpush.bf16.msra.mxu0 0
    %176 = vmatpush.bf16.msra.mxu0 0
    %177 = vmatpush.bf16.msra.mxu0 0
    %178 = vmatpush.bf16.msra.mxu0 0
    %179 = vmatpush.bf16.msra.mxu0 %v109
    %180 = vmatpush.bf16.msra.mxu0 %v108
    %181 = vmatmul.bf16.gmra.mxu0 %v171
    %v182 = vpop.f32.mrf.mxu0
    %v183 = vadd.f32 0.0, %v182
    %v184 = vpop.f32.mrf.mxu0
    %185 = vdwg.mxu0
    %v187 = vrot.slane %v183, 7
    %v189 = vadd.f32 %v97, %v187
    %v190 = vxor.u32 %v189, 2147483648
    %v191 = vmul.f32 %v190, 1.442695
    %v192 = vpow.pop %v191
    %v193 = vadd.f32 %v192, 1.0
    %v194 = vrcp.pop %v193
    %v195 = vmul.f32 %v193, %v194
    %v196 = vsub.f32 1.0, %v195
    %v197 = vmul.f32 %v194, %v196
    %v198 = vadd.f32 %v194, %v197
    %vm199 = vweird.f32 %v193
    %vm200 = vweird.f32 %v194
    %vm201 = vmor %vm199, %vm200
    %v202 = vsel %vm201, %v194, %v198
    %v203 = vand.u32 2147483647, %v193
    %vm204 = vcmp.eq.f32.partialorder %v203, 8.507059e+37
    %v205 = vand.u32 %v193, 2147483648
    %v206 = vor.u32 1.1754944e-38, %v205
    %v207 = vsel %vm204, %v206, %v202
    %v208 = vmul.f32 1.0, %v207
    %v209 = vtanh.pop %v189
    %v211 = vrot.slane %v159, 7
    %v213 = vmul.f32 %v208, %v211
    %215 = vrot.lane.b32.xlu0 %v209, 64
    %v216 = vpop.permute.xlu0 %215
    %v218 = vmul.f32 %v208, %v216
    %220 = vrot.lane.b32.xlu0 %v218, 32
    %v221 = vpop.permute.xlu0 %220
    %v223 = vadd.f32 %v213, %v221
    %v224 = vtanh.pop %v223
    %226 = vrot.lane.b32.xlu0 %v224, 64
    %v227 = vpop.permute.xlu0 %226
    %v229 = vmul.f32 %v208, %v227
    %v230 = vpack.c.bf16 %v229, %v229
    %v232 = vshrl.u32 %v230, 16
    %234 = vrot.lane.b32.xlu0 %v232, 32
    %v235 = vpop.permute.xlu0 %234
    %v237 = vsel %vm83, %v235, 0
    %239 = vmatpush.bf16.msra.mxu0 0
    %240 = vmatpush.bf16.msra.mxu0 0
    %241 = vmatpush.bf16.msra.mxu0 0
    %242 = vmatpush.bf16.msra.mxu0 0
    %243 = vmatpush.bf16.msra.mxu0 0
    %244 = vmatpush.bf16.msra.mxu0 0
    %245 = vmatpush.bf16.msra.mxu0 %v109
    %246 = vmatpush.bf16.msra.mxu0 %v108
    %247 = vmatmul.bf16.gmra.mxu0 %v237
    %v248 = vpop.f32.mrf.mxu0
    %v249 = vadd.f32 0.0, %v248
    %v250 = vpop.f32.mrf.mxu0
    %251 = vdwg.mxu0
    %v253 = vrot.slane %v249, 6
    %v255 = vadd.f32 %v97, %v253
    %v256 = vxor.u32 %v255, 2147483648
    %v257 = vmul.f32 %v256, 1.442695
    %v258 = vpow.pop %v257
    %v259 = vadd.f32 %v258, 1.0
    %v260 = vrcp.pop %v259
    %v261 = vmul.f32 %v259, %v260
    %v262 = vsub.f32 1.0, %v261
    %v263 = vmul.f32 %v260, %v262
    %v264 = vadd.f32 %v260, %v263
    %vm265 = vweird.f32 %v259
    %vm266 = vweird.f32 %v260
    %vm267 = vmor %vm265, %vm266
    %v268 = vsel %vm267, %v260, %v264
    %v269 = vand.u32 2147483647, %v259
    %vm270 = vcmp.eq.f32.partialorder %v269, 8.507059e+37
    %v271 = vand.u32 %v259, 2147483648
    %v272 = vor.u32 1.1754944e-38, %v271
    %v273 = vsel %vm270, %v272, %v268
    %v274 = vmul.f32 1.0, %v273
    %v275 = vtanh.pop %v255
    %v277 = vrot.slane %v223, 7
    %v279 = vmul.f32 %v274, %v277
    %281 = vrot.lane.b32.xlu0 %v275, 64
    %v282 = vpop.permute.xlu0 %281
    %v284 = vmul.f32 %v274, %v282
    %286 = vrot.lane.b32.xlu0 %v284, 32
    %v287 = vpop.permute.xlu0 %286
    %v289 = vadd.f32 %v279, %v287
    %v290 = vtanh.pop %v289
    %292 = vrot.lane.b32.xlu0 %v290, 64
    %v293 = vpop.permute.xlu0 %292
    %v295 = vmul.f32 %v274, %v293
    %v296 = vpack.c.bf16 %v295, %v295
    %v298 = vrot.slane %v296, 1
    %299 = vrot.lane.b32.xlu0 %v298, 32
    %v300 = vpop.permute.xlu0 %299
    %v302 = vsel %vm83, %v300, 0
    %304 = vmatpush.bf16.msra.mxu0 0
    %305 = vmatpush.bf16.msra.mxu0 0
    %306 = vmatpush.bf16.msra.mxu0 0
    %307 = vmatpush.bf16.msra.mxu0 0
    %308 = vmatpush.bf16.msra.mxu0 0
    %309 = vmatpush.bf16.msra.mxu0 0
    %310 = vmatpush.bf16.msra.mxu0 %v109
    %311 = vmatpush.bf16.msra.mxu0 %v108
    %312 = vmatmul.bf16.gmra.mxu0 %v302
    %v313 = vpop.f32.mrf.mxu0
    %v314 = vadd.f32 0.0, %v313
    %v315 = vpop.f32.mrf.mxu0
    %316 = vdwg.mxu0
    %v318 = vrot.slane %v314, 5
    %v320 = vadd.f32 %v97, %v318
    %v321 = vxor.u32 %v320, 2147483648
    %v322 = vmul.f32 %v321, 1.442695
    %v323 = vpow.pop %v322
    %v324 = vadd.f32 %v323, 1.0
    %v325 = vrcp.pop %v324
    %v326 = vmul.f32 %v324, %v325
    %v327 = vsub.f32 1.0, %v326
    %v328 = vmul.f32 %v325, %v327
    %v329 = vadd.f32 %v325, %v328
    %vm330 = vweird.f32 %v324
    %vm331 = vweird.f32 %v325
    %vm332 = vmor %vm330, %vm331
    %v333 = vsel %vm332, %v325, %v329
    %v334 = vand.u32 2147483647, %v324
    %vm335 = vcmp.eq.f32.partialorder %v334, 8.507059e+37
    %v336 = vand.u32 %v324, 2147483648
    %v337 = vor.u32 1.1754944e-38, %v336
    %v338 = vsel %vm335, %v337, %v333
    %v339 = vmul.f32 1.0, %v338
    %v340 = vtanh.pop %v320
    %v342 = vrot.slane %v289, 7
    %v344 = vmul.f32 %v339, %v342
    %346 = vrot.lane.b32.xlu0 %v340, 64
    %v347 = vpop.permute.xlu0 %346
    %v349 = vmul.f32 %v339, %v347
    %351 = vrot.lane.b32.xlu0 %v349, 32
    %v352 = vpop.permute.xlu0 %351
    %v354 = vadd.f32 %v344, %v352
    %v355 = vtanh.pop %v354
    %357 = vrot.lane.b32.xlu0 %v355, 64
    %v358 = vpop.permute.xlu0 %357
    %v360 = vmul.f32 %v339, %v358
    %v361 = vpack.c.bf16 %v360, %v360
    %v363 = vshrl.u32 %v361, 16
    %v365 = vrot.slane %v363, 1
    %366 = vrot.lane.b32.xlu0 %v365, 32
    %v367 = vpop.permute.xlu0 %366
    %v369 = vsel %vm83, %v367, 0
    %371 = vmatpush.bf16.msra.mxu0 0
    %372 = vmatpush.bf16.msra.mxu0 0
    %373 = vmatpush.bf16.msra.mxu0 0
    %374 = vmatpush.bf16.msra.mxu0 0
    %375 = vmatpush.bf16.msra.mxu0 0
    %376 = vmatpush.bf16.msra.mxu0 0
    %377 = vmatpush.bf16.msra.mxu0 %v109
    %378 = vmatpush.bf16.msra.mxu0 %v108
    %379 = vmatmul.bf16.gmra.mxu0 %v369
    %v380 = vpop.f32.mrf.mxu0
    %v381 = vadd.f32 0.0, %v380
    %v382 = vpop.f32.mrf.mxu0
    %383 = vdwg.mxu0
    %v385 = vrot.slane %v381, 4
    %v387 = vadd.f32 %v97, %v385
    %v388 = vxor.u32 %v387, 2147483648
    %v389 = vmul.f32 %v388, 1.442695
    %v390 = vpow.pop %v389
    %v391 = vadd.f32 %v390, 1.0
    %v392 = vrcp.pop %v391
    %v393 = vmul.f32 %v391, %v392
    %v394 = vsub.f32 1.0, %v393
    %v395 = vmul.f32 %v392, %v394
    %v396 = vadd.f32 %v392, %v395
    %vm397 = vweird.f32 %v391
    %vm398 = vweird.f32 %v392
    %vm399 = vmor %vm397, %vm398
    %v400 = vsel %vm399, %v392, %v396
    %v401 = vand.u32 2147483647, %v391
    %vm402 = vcmp.eq.f32.partialorder %v401, 8.507059e+37
    %v403 = vand.u32 %v391, 2147483648
    %v404 = vor.u32 1.1754944e-38, %v403
    %v405 = vsel %vm402, %v404, %v400
    %v406 = vmul.f32 1.0, %v405
    %v407 = vtanh.pop %v387
    %v409 = vrot.slane %v354, 7
    %v411 = vmul.f32 %v406, %v409
    %413 = vrot.lane.b32.xlu0 %v407, 64
    %v414 = vpop.permute.xlu0 %413
    %v416 = vmul.f32 %v406, %v414
    %418 = vrot.lane.b32.xlu0 %v416, 32
    %v419 = vpop.permute.xlu0 %418
    %v421 = vadd.f32 %v411, %v419
    %v422 = vtanh.pop %v421
    %424 = vrot.lane.b32.xlu0 %v422, 64
    %v425 = vpop.permute.xlu0 %424
    %v427 = vmul.f32 %v406, %v425
    %v428 = vpack.c.bf16 %v427, %v427
    %v430 = vrot.slane %v428, 2
    %431 = vrot.lane.b32.xlu0 %v430, 32
    %v432 = vpop.permute.xlu0 %431
    %v434 = vsel %vm83, %v432, 0
    %436 = vmatpush.bf16.msra.mxu0 0
    %437 = vmatpush.bf16.msra.mxu0 0
    %438 = vmatpush.bf16.msra.mxu0 0
    %439 = vmatpush.bf16.msra.mxu0 0
    %440 = vmatpush.bf16.msra.mxu0 0
    %441 = vmatpush.bf16.msra.mxu0 0
    %442 = vmatpush.bf16.msra.mxu0 %v109
    %443 = vmatpush.bf16.msra.mxu0 %v108
    %444 = vmatmul.bf16.gmra.mxu0 %v434
    %v445 = vpop.f32.mrf.mxu0
    %v446 = vadd.f32 0.0, %v445
    %v447 = vpop.f32.mrf.mxu0
    %448 = vdwg.mxu0
    %v450 = vrot.slane %v446, 3
    %v452 = vadd.f32 %v97, %v450
    %v453 = vxor.u32 %v452, 2147483648
    %v454 = vmul.f32 %v453, 1.442695
    %v455 = vpow.pop %v454
    %v456 = vadd.f32 %v455, 1.0
    %v457 = vrcp.pop %v456
    %v458 = vmul.f32 %v456, %v457
    %v459 = vsub.f32 1.0, %v458
    %v460 = vmul.f32 %v457, %v459
    %v461 = vadd.f32 %v457, %v460
    %vm462 = vweird.f32 %v456
    %vm463 = vweird.f32 %v457
    %vm464 = vmor %vm462, %vm463
    %v465 = vsel %vm464, %v457, %v461
    %v466 = vand.u32 2147483647, %v456
    %vm467 = vcmp.eq.f32.partialorder %v466, 8.507059e+37
    %v468 = vand.u32 %v456, 2147483648
    %v469 = vor.u32 1.1754944e-38, %v468
    %v470 = vsel %vm467, %v469, %v465
    %v471 = vmul.f32 1.0, %v470
    %v472 = vtanh.pop %v452
    %v474 = vrot.slane %v421, 7
    %v476 = vmul.f32 %v471, %v474
    %478 = vrot.lane.b32.xlu0 %v472, 64
    %v479 = vpop.permute.xlu0 %478
    %v481 = vmul.f32 %v471, %v479
    %483 = vrot.lane.b32.xlu0 %v481, 32
    %v484 = vpop.permute.xlu0 %483
    %v486 = vadd.f32 %v476, %v484
    %v487 = vtanh.pop %v486
    %489 = vrot.lane.b32.xlu0 %v487, 64
    %v490 = vpop.permute.xlu0 %489
    %v492 = vmul.f32 %v471, %v490
    %v493 = vpack.c.bf16 %v492, %v492
    %v495 = vshrl.u32 %v493, 16
    %v497 = vrot.slane %v495, 2
    %498 = vrot.lane.b32.xlu0 %v497, 32
    %v499 = vpop.permute.xlu0 %498
    %v501 = vsel %vm83, %v499, 0
    %503 = vmatpush.bf16.msra.mxu0 0
    %504 = vmatpush.bf16.msra.mxu0 0
    %505 = vmatpush.bf16.msra.mxu0 0
    %506 = vmatpush.bf16.msra.mxu0 0
    %507 = vmatpush.bf16.msra.mxu0 0
    %508 = vmatpush.bf16.msra.mxu0 0
    %509 = vmatpush.bf16.msra.mxu0 %v109
    %510 = vmatpush.bf16.msra.mxu0 %v108
    %511 = vmatmul.bf16.gmra.mxu0 %v501
    %v512 = vpop.f32.mrf.mxu0
    %v513 = vadd.f32 0.0, %v512
    %v514 = vpop.f32.mrf.mxu0
    %515 = vdwg.mxu0
    %v517 = vrot.slane %v513, 2
    %v519 = vadd.f32 %v97, %v517
    %v520 = vxor.u32 %v519, 2147483648
    %v521 = vmul.f32 %v520, 1.442695
    %v522 = vpow.pop %v521
    %v523 = vadd.f32 %v522, 1.0
    %v524 = vrcp.pop %v523
    %v525 = vmul.f32 %v523, %v524
    %v526 = vsub.f32 1.0, %v525
    %v527 = vmul.f32 %v524, %v526
    %v528 = vadd.f32 %v524, %v527
    %vm529 = vweird.f32 %v523
    %vm530 = vweird.f32 %v524
    %vm531 = vmor %vm529, %vm530
    %v532 = vsel %vm531, %v524, %v528
    %v533 = vand.u32 2147483647, %v523
    %vm534 = vcmp.eq.f32.partialorder %v533, 8.507059e+37
    %v535 = vand.u32 %v523, 2147483648
    %v536 = vor.u32 1.1754944e-38, %v535
    %v537 = vsel %vm534, %v536, %v532
    %v538 = vmul.f32 1.0, %v537
    %v539 = vtanh.pop %v519
    %v541 = vrot.slane %v486, 7
    %v543 = vmul.f32 %v538, %v541
    %545 = vrot.lane.b32.xlu0 %v539, 64
    %v546 = vpop.permute.xlu0 %545
    %v548 = vmul.f32 %v538, %v546
    %550 = vrot.lane.b32.xlu0 %v548, 32
    %v551 = vpop.permute.xlu0 %550
    %v553 = vadd.f32 %v543, %v551
    %v554 = vtanh.pop %v553
    %556 = vrot.lane.b32.xlu0 %v554, 64
    %v557 = vpop.permute.xlu0 %556
    %v559 = vmul.f32 %v538, %v557
    %v560 = vpack.c.bf16 %v559, %v559
    %v562 = vrot.slane %v560, 3
    %563 = vrot.lane.b32.xlu0 %v562, 32
    %v564 = vpop.permute.xlu0 %563
    %v566 = vsel %vm83, %v564, 0
    %568 = vmatpush.bf16.msra.mxu0 0
    %569 = vmatpush.bf16.msra.mxu0 0
    %570 = vmatpush.bf16.msra.mxu0 0
    %571 = vmatpush.bf16.msra.mxu0 0
    %572 = vmatpush.bf16.msra.mxu0 0
    %573 = vmatpush.bf16.msra.mxu0 0
    %574 = vmatpush.bf16.msra.mxu0 %v109
    %575 = vmatpush.bf16.msra.mxu0 %v108
    %576 = vmatmul.bf16.gmra.mxu0 %v566
    %v577 = vpop.f32.mrf.mxu0
    %v578 = vadd.f32 0.0, %v577
    %v579 = vpop.f32.mrf.mxu0
    %580 = vdwg.mxu0
    %v582 = vrot.slane %v578, 1
    %v584 = vadd.f32 %v97, %v582
    %v585 = vxor.u32 %v584, 2147483648
    %v586 = vmul.f32 %v585, 1.442695
    %v587 = vpow.pop %v586
    %v588 = vadd.f32 %v587, 1.0
    %v589 = vrcp.pop %v588
    %v590 = vmul.f32 %v588, %v589
    %v591 = vsub.f32 1.0, %v590
    %v592 = vmul.f32 %v589, %v591
    %v593 = vadd.f32 %v589, %v592
    %vm594 = vweird.f32 %v588
    %vm595 = vweird.f32 %v589
    %vm596 = vmor %vm594, %vm595
    %v597 = vsel %vm596, %v589, %v593
    %v598 = vand.u32 2147483647, %v588
    %vm599 = vcmp.eq.f32.partialorder %v598, 8.507059e+37
    %v600 = vand.u32 %v588, 2147483648
    %v601 = vor.u32 1.1754944e-38, %v600
    %v602 = vsel %vm599, %v601, %v597
    %v603 = vmul.f32 1.0, %v602
    %v604 = vtanh.pop %v584
    %v606 = vrot.slane %v553, 7
    %v608 = vmul.f32 %v603, %v606
    %610 = vrot.lane.b32.xlu0 %v604, 64
    %v611 = vpop.permute.xlu0 %610
    %v613 = vmul.f32 %v603, %v611
    %615 = vrot.lane.b32.xlu0 %v613, 32
    %v616 = vpop.permute.xlu0 %615
    %v618 = vadd.f32 %v608, %v616
    %v619 = vtanh.pop %v618
    %621 = vrot.lane.b32.xlu0 %v619, 64
    %v622 = vpop.permute.xlu0 %621
    %v624 = vmul.f32 %v603, %v622
    %vm625 = vcmask 1040384
    %v626 = vsel %vm625, %v165, %v229
    %vm627 = vcmask 1041408
    %v628 = vsel %vm627, %v626, %v295
    %vm629 = vcmask 1042432
    %v630 = vsel %vm629, %v628, %v360
    %vm631 = vcmask 1043456
    %v632 = vsel %vm631, %v630, %v427
    %vm633 = vcmask 1044480
    %v634 = vsel %vm633, %v632, %v492
    %vm635 = vcmask 1045504
    %v636 = vsel %vm635, %v634, %v559
    %vm637 = vcmask 1046528
    %v638 = vsel %vm637, %v636, %v624
    %s639 = scalar_lea.vmem [#allocation5], 32
    %v640 = vld [vmem:[%s639] sm:$0xf]
    %v641 = vld [vmem:[%s639 + $0x4] sm:$0xf]
    %v642 = vld [vmem:[%s639 + $0x8] sm:$0xf]
    %v643 = vld [vmem:[%s639 + $0xc] sm:$0xf]
    %v644 = vld [vmem:[%s639 + $0x10] sm:$0xf]
    %v645 = vld [vmem:[%s639 + $0x14] sm:$0xf]
    %v646 = vld [vmem:[%s639 + $0x18] sm:$0xf]
    %v647 = vld [vmem:[%s639 + $0x1c] sm:$0xf]
    %v648 = vpack.c.bf16 %v638, %v638
    %v649 = vperm.slane %v59, 1
    %651 = vrot.lane.b32.xlu0 %v648, 32
    %v652 = vpop.permute.xlu0 %651
    %v657 = vunpack.c.l.b16 %v640
    %v658 = vunpack.c.l.b16 %v641
    %v659 = vunpack.c.l.b16 %v642
    %v660 = vunpack.c.l.b16 %v643
    %v661 = vpack.c.b16 %v658, %v657
    %v662 = vpack.c.b16 %v660, %v659
    %v666 = vsel %vm83, %v652, 0
    %668 = vmatpush.bf16.msra.mxu0 0
    %669 = vmatpush.bf16.msra.mxu0 0
    %670 = vmatpush.bf16.msra.mxu0 0
    %671 = vmatpush.bf16.msra.mxu0 0
    %672 = vmatpush.bf16.msra.mxu0 0
    %673 = vmatpush.bf16.msra.mxu0 0
    %674 = vmatpush.bf16.msra.mxu0 %v662
    %675 = vmatpush.bf16.msra.mxu0 %v661
    %676 = vmatmul.bf16.gmra.mxu0 %v666
    %v677 = vpop.f32.mrf.mxu0
    %v678 = vadd.f32 %v649, %v677
    %v679 = vpop.f32.mrf.mxu0
    %680 = vdwg.mxu0
    %v685 = vunpack.c.l.b16 %v644
    %v686 = vunpack.c.l.b16 %v645
    %v687 = vunpack.c.l.b16 %v646
    %v688 = vunpack.c.l.b16 %v647
    %v689 = vpack.c.b16 %v686, %v685
    %v690 = vpack.c.b16 %v688, %v687
    %693 = vmatpush.bf16.msra.mxu0 0
    %694 = vmatpush.bf16.msra.mxu0 0
    %695 = vmatpush.bf16.msra.mxu0 0
    %696 = vmatpush.bf16.msra.mxu0 0
    %697 = vmatpush.bf16.msra.mxu0 0
    %698 = vmatpush.bf16.msra.mxu0 0
    %699 = vmatpush.bf16.msra.mxu0 %v690
    %700 = vmatpush.bf16.msra.mxu0 %v689
    %701 = vmatmul.bf16.gmra.mxu0 %v113
    %v702 = vpop.f32.mrf.mxu0
    %v703 = vadd.f32 0.0, %v702
    %v704 = vpop.f32.mrf.mxu0
    %705 = vdwg.mxu0
    %v706 = vadd.f32 %v678, %v703
    %v707 = vxor.u32 %v706, 2147483648
    %v708 = vmul.f32 %v707, 1.442695
    %v709 = vpow.pop %v708
    %v710 = vadd.f32 %v709, 1.0
    %v711 = vrcp.pop %v710
    %v712 = vmul.f32 %v710, %v711
    %v713 = vsub.f32 1.0, %v712
    %v714 = vmul.f32 %v711, %v713
    %v715 = vadd.f32 %v711, %v714
    %vm716 = vweird.f32 %v710
    %vm717 = vweird.f32 %v711
    %vm718 = vmor %vm716, %vm717
    %v719 = vsel %vm718, %v711, %v715
    %v720 = vand.u32 2147483647, %v710
    %vm721 = vcmp.eq.f32.partialorder %v720, 8.507059e+37
    %v722 = vand.u32 %v710, 2147483648
    %v723 = vor.u32 1.1754944e-38, %v722
    %v724 = vsel %vm721, %v723, %v719
    %v725 = vmul.f32 1.0, %v724
    %v726 = vtanh.pop %v706
    %v727 = vmul.f32 %v725, 0.0
    %729 = vrot.lane.b32.xlu0 %v726, 64
    %v730 = vpop.permute.xlu0 %729
    %v732 = vmul.f32 %v725, %v730
    %734 = vrot.lane.b32.xlu0 %v732, 32
    %v735 = vpop.permute.xlu0 %734
    %v737 = vadd.f32 %v727, %v735
    %v738 = vtanh.pop %v737
    %740 = vrot.lane.b32.xlu0 %v738, 64
    %v741 = vpop.permute.xlu0 %740
    %v743 = vmul.f32 %v725, %v741
    %v744 = vpack.c.bf16 %v743, %v743
    %746 = vrot.lane.b32.xlu0 %v744, 32
    %v747 = vpop.permute.xlu0 %746
    %v749 = vsel %vm83, %v747, 0
    %751 = vmatpush.bf16.msra.mxu0 0
    %752 = vmatpush.bf16.msra.mxu0 0
    %753 = vmatpush.bf16.msra.mxu0 0
    %754 = vmatpush.bf16.msra.mxu0 0
    %755 = vmatpush.bf16.msra.mxu0 0
    %756 = vmatpush.bf16.msra.mxu0 0
    %757 = vmatpush.bf16.msra.mxu0 %v690
    %758 = vmatpush.bf16.msra.mxu0 %v689
    %759 = vmatmul.bf16.gmra.mxu0 %v749
    %v760 = vpop.f32.mrf.mxu0
    %v761 = vadd.f32 0.0, %v760
    %v762 = vpop.f32.mrf.mxu0
    %763 = vdwg.mxu0
    %v765 = vrot.slane %v761, 7
    %v767 = vadd.f32 %v678, %v765
    %v768 = vxor.u32 %v767, 2147483648
    %v769 = vmul.f32 %v768, 1.442695
    %v770 = vpow.pop %v769
    %v771 = vadd.f32 %v770, 1.0
    %v772 = vrcp.pop %v771
    %v773 = vmul.f32 %v771, %v772
    %v774 = vsub.f32 1.0, %v773
    %v775 = vmul.f32 %v772, %v774
    %v776 = vadd.f32 %v772, %v775
    %vm777 = vweird.f32 %v771
    %vm778 = vweird.f32 %v772
    %vm779 = vmor %vm777, %vm778
    %v780 = vsel %vm779, %v772, %v776
    %v781 = vand.u32 2147483647, %v771
    %vm782 = vcmp.eq.f32.partialorder %v781, 8.507059e+37
    %v783 = vand.u32 %v771, 2147483648
    %v784 = vor.u32 1.1754944e-38, %v783
    %v785 = vsel %vm782, %v784, %v780
    %v786 = vmul.f32 1.0, %v785
    %v787 = vtanh.pop %v767
    %v789 = vrot.slane %v737, 7
    %v791 = vmul.f32 %v786, %v789
    %793 = vrot.lane.b32.xlu0 %v787, 64
    %v794 = vpop.permute.xlu0 %793
    %v796 = vmul.f32 %v786, %v794
    %798 = vrot.lane.b32.xlu0 %v796, 32
    %v799 = vpop.permute.xlu0 %798
    %v801 = vadd.f32 %v791, %v799
    %v802 = vtanh.pop %v801
    %804 = vrot.lane.b32.xlu0 %v802, 64
    %v805 = vpop.permute.xlu0 %804
    %v807 = vmul.f32 %v786, %v805
    %v808 = vpack.c.bf16 %v807, %v807
    %v810 = vshrl.u32 %v808, 16
    %812 = vrot.lane.b32.xlu0 %v810, 32
    %v813 = vpop.permute.xlu0 %812
    %v815 = vsel %vm83, %v813, 0
    %817 = vmatpush.bf16.msra.mxu0 0
    %818 = vmatpush.bf16.msra.mxu0 0
    %819 = vmatpush.bf16.msra.mxu0 0
    %820 = vmatpush.bf16.msra.mxu0 0
    %821 = vmatpush.bf16.msra.mxu0 0
    %822 = vmatpush.bf16.msra.mxu0 0
    %823 = vmatpush.bf16.msra.mxu0 %v690
    %824 = vmatpush.bf16.msra.mxu0 %v689
    %825 = vmatmul.bf16.gmra.mxu0 %v815
    %v826 = vpop.f32.mrf.mxu0
    %v827 = vadd.f32 0.0, %v826
    %v828 = vpop.f32.mrf.mxu0
    %829 = vdwg.mxu0
    %v831 = vrot.slane %v827, 6
    %v833 = vadd.f32 %v678, %v831
    %v834 = vxor.u32 %v833, 2147483648
    %v835 = vmul.f32 %v834, 1.442695
    %v836 = vpow.pop %v835
    %v837 = vadd.f32 %v836, 1.0
    %v838 = vrcp.pop %v837
    %v839 = vmul.f32 %v837, %v838
    %v840 = vsub.f32 1.0, %v839
    %v841 = vmul.f32 %v838, %v840
    %v842 = vadd.f32 %v838, %v841
    %vm843 = vweird.f32 %v837
    %vm844 = vweird.f32 %v838
    %vm845 = vmor %vm843, %vm844
    %v846 = vsel %vm845, %v838, %v842
    %v847 = vand.u32 2147483647, %v837
    %vm848 = vcmp.eq.f32.partialorder %v847, 8.507059e+37
    %v849 = vand.u32 %v837, 2147483648
    %v850 = vor.u32 1.1754944e-38, %v849
    %v851 = vsel %vm848, %v850, %v846
    %v852 = vmul.f32 1.0, %v851
    %v853 = vtanh.pop %v833
    %v855 = vrot.slane %v801, 7
    %v857 = vmul.f32 %v852, %v855
    %859 = vrot.lane.b32.xlu0 %v853, 64
    %v860 = vpop.permute.xlu0 %859
    %v862 = vmul.f32 %v852, %v860
    %864 = vrot.lane.b32.xlu0 %v862, 32
    %v865 = vpop.permute.xlu0 %864
    %v867 = vadd.f32 %v857, %v865
    %v868 = vtanh.pop %v867
    %870 = vrot.lane.b32.xlu0 %v868, 64
    %v871 = vpop.permute.xlu0 %870
    %v873 = vmul.f32 %v852, %v871
    %v874 = vpack.c.bf16 %v873, %v873
    %v876 = vrot.slane %v874, 1
    %877 = vrot.lane.b32.xlu0 %v876, 32
    %v878 = vpop.permute.xlu0 %877
    %v880 = vsel %vm83, %v878, 0
    %882 = vmatpush.bf16.msra.mxu0 0
    %883 = vmatpush.bf16.msra.mxu0 0
    %884 = vmatpush.bf16.msra.mxu0 0
    %885 = vmatpush.bf16.msra.mxu0 0
    %886 = vmatpush.bf16.msra.mxu0 0
    %887 = vmatpush.bf16.msra.mxu0 0
    %888 = vmatpush.bf16.msra.mxu0 %v690
    %889 = vmatpush.bf16.msra.mxu0 %v689
    %890 = vmatmul.bf16.gmra.mxu0 %v880
    %v891 = vpop.f32.mrf.mxu0
    %v892 = vadd.f32 0.0, %v891
    %v893 = vpop.f32.mrf.mxu0
    %894 = vdwg.mxu0
    %v896 = vrot.slane %v892, 5
    %v898 = vadd.f32 %v678, %v896
    %v899 = vxor.u32 %v898, 2147483648
    %v900 = vmul.f32 %v899, 1.442695
    %v901 = vpow.pop %v900
    %v902 = vadd.f32 %v901, 1.0
    %v903 = vrcp.pop %v902
    %v904 = vmul.f32 %v902, %v903
    %v905 = vsub.f32 1.0, %v904
    %v906 = vmul.f32 %v903, %v905
    %v907 = vadd.f32 %v903, %v906
    %vm908 = vweird.f32 %v902
    %vm909 = vweird.f32 %v903
    %vm910 = vmor %vm908, %vm909
    %v911 = vsel %vm910, %v903, %v907
    %v912 = vand.u32 2147483647, %v902
    %vm913 = vcmp.eq.f32.partialorder %v912, 8.507059e+37
    %v914 = vand.u32 %v902, 2147483648
    %v915 = vor.u32 1.1754944e-38, %v914
    %v916 = vsel %vm913, %v915, %v911
    %v917 = vmul.f32 1.0, %v916
    %v918 = vtanh.pop %v898
    %v920 = vrot.slane %v867, 7
    %v922 = vmul.f32 %v917, %v920
    %924 = vrot.lane.b32.xlu0 %v918, 64
    %v925 = vpop.permute.xlu0 %924
    %v927 = vmul.f32 %v917, %v925
    %929 = vrot.lane.b32.xlu0 %v927, 32
    %v930 = vpop.permute.xlu0 %929
    %v932 = vadd.f32 %v922, %v930
    %v933 = vtanh.pop %v932
    %935 = vrot.lane.b32.xlu0 %v933, 64
    %v936 = vpop.permute.xlu0 %935
    %v938 = vmul.f32 %v917, %v936
    %v939 = vpack.c.bf16 %v938, %v938
    %v941 = vshrl.u32 %v939, 16
    %v943 = vrot.slane %v941, 1
    %944 = vrot.lane.b32.xlu0 %v943, 32
    %v945 = vpop.permute.xlu0 %944
    %v947 = vsel %vm83, %v945, 0
    %949 = vmatpush.bf16.msra.mxu0 0
    %950 = vmatpush.bf16.msra.mxu0 0
    %951 = vmatpush.bf16.msra.mxu0 0
    %952 = vmatpush.bf16.msra.mxu0 0
    %953 = vmatpush.bf16.msra.mxu0 0
    %954 = vmatpush.bf16.msra.mxu0 0
    %955 = vmatpush.bf16.msra.mxu0 %v690
    %956 = vmatpush.bf16.msra.mxu0 %v689
    %957 = vmatmul.bf16.gmra.mxu0 %v947
    %v958 = vpop.f32.mrf.mxu0
    %v959 = vadd.f32 0.0, %v958
    %v960 = vpop.f32.mrf.mxu0
    %961 = vdwg.mxu0
    %v963 = vrot.slane %v959, 4
    %v965 = vadd.f32 %v678, %v963
    %v966 = vxor.u32 %v965, 2147483648
    %v967 = vmul.f32 %v966, 1.442695
    %v968 = vpow.pop %v967
    %v969 = vadd.f32 %v968, 1.0
    %v970 = vrcp.pop %v969
    %v971 = vmul.f32 %v969, %v970
    %v972 = vsub.f32 1.0, %v971
    %v973 = vmul.f32 %v970, %v972
    %v974 = vadd.f32 %v970, %v973
    %vm975 = vweird.f32 %v969
    %vm976 = vweird.f32 %v970
    %vm977 = vmor %vm975, %vm976
    %v978 = vsel %vm977, %v970, %v974
    %v979 = vand.u32 2147483647, %v969
    %vm980 = vcmp.eq.f32.partialorder %v979, 8.507059e+37
    %v981 = vand.u32 %v969, 2147483648
    %v982 = vor.u32 1.1754944e-38, %v981
    %v983 = vsel %vm980, %v982, %v978
    %v984 = vmul.f32 1.0, %v983
    %v985 = vtanh.pop %v965
    %v987 = vrot.slane %v932, 7
    %v989 = vmul.f32 %v984, %v987
    %991 = vrot.lane.b32.xlu0 %v985, 64
    %v992 = vpop.permute.xlu0 %991
    %v994 = vmul.f32 %v984, %v992
    %996 = vrot.lane.b32.xlu0 %v994, 32
    %v997 = vpop.permute.xlu0 %996
    %v999 = vadd.f32 %v989, %v997
    %v1000 = vtanh.pop %v999
    %1002 = vrot.lane.b32.xlu0 %v1000, 64
    %v1003 = vpop.permute.xlu0 %1002
    %v1005 = vmul.f32 %v984, %v1003
    %v1006 = vpack.c.bf16 %v1005, %v1005
    %v1008 = vrot.slane %v1006, 2
    %1009 = vrot.lane.b32.xlu0 %v1008, 32
    %v1010 = vpop.permute.xlu0 %1009
    %v1012 = vsel %vm83, %v1010, 0
    %1014 = vmatpush.bf16.msra.mxu0 0
    %1015 = vmatpush.bf16.msra.mxu0 0
    %1016 = vmatpush.bf16.msra.mxu0 0
    %1017 = vmatpush.bf16.msra.mxu0 0
    %1018 = vmatpush.bf16.msra.mxu0 0
    %1019 = vmatpush.bf16.msra.mxu0 0
    %1020 = vmatpush.bf16.msra.mxu0 %v690
    %1021 = vmatpush.bf16.msra.mxu0 %v689
    %1022 = vmatmul.bf16.gmra.mxu0 %v1012
    %v1023 = vpop.f32.mrf.mxu0
    %v1024 = vadd.f32 0.0, %v1023
    %v1025 = vpop.f32.mrf.mxu0
    %1026 = vdwg.mxu0
    %v1028 = vrot.slane %v1024, 3
    %v1030 = vadd.f32 %v678, %v1028
    %v1031 = vxor.u32 %v1030, 2147483648
    %v1032 = vmul.f32 %v1031, 1.442695
    %v1033 = vpow.pop %v1032
    %v1034 = vadd.f32 %v1033, 1.0
    %v1035 = vrcp.pop %v1034
    %v1036 = vmul.f32 %v1034, %v1035
    %v1037 = vsub.f32 1.0, %v1036
    %v1038 = vmul.f32 %v1035, %v1037
    %v1039 = vadd.f32 %v1035, %v1038
    %vm1040 = vweird.f32 %v1034
    %vm1041 = vweird.f32 %v1035
    %vm1042 = vmor %vm1040, %vm1041
    %v1043 = vsel %vm1042, %v1035, %v1039
    %v1044 = vand.u32 2147483647, %v1034
    %vm1045 = vcmp.eq.f32.partialorder %v1044, 8.507059e+37
    %v1046 = vand.u32 %v1034, 2147483648
    %v1047 = vor.u32 1.1754944e-38, %v1046
    %v1048 = vsel %vm1045, %v1047, %v1043
    %v1049 = vmul.f32 1.0, %v1048
    %v1050 = vtanh.pop %v1030
    %v1052 = vrot.slane %v999, 7
    %v1054 = vmul.f32 %v1049, %v1052
    %1056 = vrot.lane.b32.xlu0 %v1050, 64
    %v1057 = vpop.permute.xlu0 %1056
    %v1059 = vmul.f32 %v1049, %v1057
    %1061 = vrot.lane.b32.xlu0 %v1059, 32
    %v1062 = vpop.permute.xlu0 %1061
    %v1064 = vadd.f32 %v1054, %v1062
    %v1065 = vtanh.pop %v1064
    %1067 = vrot.lane.b32.xlu0 %v1065, 64
    %v1068 = vpop.permute.xlu0 %1067
    %v1070 = vmul.f32 %v1049, %v1068
    %v1071 = vpack.c.bf16 %v1070, %v1070
    %v1073 = vshrl.u32 %v1071, 16
    %v1075 = vrot.slane %v1073, 2
    %1076 = vrot.lane.b32.xlu0 %v1075, 32
    %v1077 = vpop.permute.xlu0 %1076
    %v1079 = vsel %vm83, %v1077, 0
    %1081 = vmatpush.bf16.msra.mxu0 0
    %1082 = vmatpush.bf16.msra.mxu0 0
    %1083 = vmatpush.bf16.msra.mxu0 0
    %1084 = vmatpush.bf16.msra.mxu0 0
    %1085 = vmatpush.bf16.msra.mxu0 0
    %1086 = vmatpush.bf16.msra.mxu0 0
    %1087 = vmatpush.bf16.msra.mxu0 %v690
    %1088 = vmatpush.bf16.msra.mxu0 %v689
    %1089 = vmatmul.bf16.gmra.mxu0 %v1079
    %v1090 = vpop.f32.mrf.mxu0
    %v1091 = vadd.f32 0.0, %v1090
    %v1092 = vpop.f32.mrf.mxu0
    %1093 = vdwg.mxu0
    %v1095 = vrot.slane %v1091, 2
    %v1097 = vadd.f32 %v678, %v1095
    %v1098 = vxor.u32 %v1097, 2147483648
    %v1099 = vmul.f32 %v1098, 1.442695
    %v1100 = vpow.pop %v1099
    %v1101 = vadd.f32 %v1100, 1.0
    %v1102 = vrcp.pop %v1101
    %v1103 = vmul.f32 %v1101, %v1102
    %v1104 = vsub.f32 1.0, %v1103
    %v1105 = vmul.f32 %v1102, %v1104
    %v1106 = vadd.f32 %v1102, %v1105
    %vm1107 = vweird.f32 %v1101
    %vm1108 = vweird.f32 %v1102
    %vm1109 = vmor %vm1107, %vm1108
    %v1110 = vsel %vm1109, %v1102, %v1106
    %v1111 = vand.u32 2147483647, %v1101
    %vm1112 = vcmp.eq.f32.partialorder %v1111, 8.507059e+37
    %v1113 = vand.u32 %v1101, 2147483648
    %v1114 = vor.u32 1.1754944e-38, %v1113
    %v1115 = vsel %vm1112, %v1114, %v1110
    %v1116 = vmul.f32 1.0, %v1115
    %v1117 = vtanh.pop %v1097
    %v1119 = vrot.slane %v1064, 7
    %v1121 = vmul.f32 %v1116, %v1119
    %1123 = vrot.lane.b32.xlu0 %v1117, 64
    %v1124 = vpop.permute.xlu0 %1123
    %v1126 = vmul.f32 %v1116, %v1124
    %1128 = vrot.lane.b32.xlu0 %v1126, 32
    %v1129 = vpop.permute.xlu0 %1128
    %v1131 = vadd.f32 %v1121, %v1129
    %v1132 = vtanh.pop %v1131
    %1134 = vrot.lane.b32.xlu0 %v1132, 64
    %v1135 = vpop.permute.xlu0 %1134
    %v1137 = vmul.f32 %v1116, %v1135
    %v1138 = vpack.c.bf16 %v1137, %v1137
    %v1140 = vrot.slane %v1138, 3
    %1141 = vrot.lane.b32.xlu0 %v1140, 32
    %v1142 = vpop.permute.xlu0 %1141
    %v1144 = vsel %vm83, %v1142, 0
    %1146 = vmatpush.bf16.msra.mxu0 0
    %1147 = vmatpush.bf16.msra.mxu0 0
    %1148 = vmatpush.bf16.msra.mxu0 0
    %1149 = vmatpush.bf16.msra.mxu0 0
    %1150 = vmatpush.bf16.msra.mxu0 0
    %1151 = vmatpush.bf16.msra.mxu0 0
    %1152 = vmatpush.bf16.msra.mxu0 %v690
    %1153 = vmatpush.bf16.msra.mxu0 %v689
    %1154 = vmatmul.bf16.gmra.mxu0 %v1144
    %v1155 = vpop.f32.mrf.mxu0
    %v1156 = vadd.f32 0.0, %v1155
    %v1157 = vpop.f32.mrf.mxu0
    %1158 = vdwg.mxu0
    %v1160 = vrot.slane %v1156, 1
    %v1162 = vadd.f32 %v678, %v1160
    %v1163 = vxor.u32 %v1162, 2147483648
    %v1164 = vmul.f32 %v1163, 1.442695
    %v1165 = vpow.pop %v1164
    %v1166 = vadd.f32 %v1165, 1.0
    %v1167 = vrcp.pop %v1166
    %v1168 = vmul.f32 %v1166, %v1167
    %v1169 = vsub.f32 1.0, %v1168
    %v1170 = vmul.f32 %v1167, %v1169
    %v1171 = vadd.f32 %v1167, %v1170
    %vm1172 = vweird.f32 %v1166
    %vm1173 = vweird.f32 %v1167
    %vm1174 = vmor %vm1172, %vm1173
    %v1175 = vsel %vm1174, %v1167, %v1171
    %v1176 = vand.u32 2147483647, %v1166
    %vm1177 = vcmp.eq.f32.partialorder %v1176, 8.507059e+37
    %v1178 = vand.u32 %v1166, 2147483648
    %v1179 = vor.u32 1.1754944e-38, %v1178
    %v1180 = vsel %vm1177, %v1179, %v1175
    %v1181 = vmul.f32 1.0, %v1180
    %v1182 = vtanh.pop %v1162
    %v1184 = vrot.slane %v1131, 7
    %v1186 = vmul.f32 %v1181, %v1184
    %1188 = vrot.lane.b32.xlu0 %v1182, 64
    %v1189 = vpop.permute.xlu0 %1188
    %v1191 = vmul.f32 %v1181, %v1189
    %1193 = vrot.lane.b32.xlu0 %v1191, 32
    %v1194 = vpop.permute.xlu0 %1193
    %v1196 = vadd.f32 %v1186, %v1194
    %v1197 = vtanh.pop %v1196
    %1199 = vrot.lane.b32.xlu0 %v1197, 64
    %v1200 = vpop.permute.xlu0 %1199
    %v1202 = vmul.f32 %v1181, %v1200
    %v1204 = vrot.slane %v59, 6
    %1205 = vrot.lane.b32.xlu0 %v1204, 96
    %v1206 = vpop.permute.xlu0 %1205
    %v1208 = vmul.f32 %v1005, %v1206
    %1210 = vrot.lane.b32.xlu0 %v1208, 32
    %v1211 = vpop.permute.xlu0 %1210
    %vm1213 = vcmask 258052
    %v1214 = vsel %vm1213, %v1211, 0.0
    %1215 = vadd.xlane.f32.xlu0 %v1214
    %v1216 = vpop.xlane.xlu0 %1215
    %v1217 = vrot.slane %v59, 5
    %1218 = vrot.lane.b32.xlu0 %v1217, 96
    %v1219 = vpop.permute.xlu0 %1218
    %v1221 = vmul.f32 %v1070, %v1219
    %1223 = vrot.lane.b32.xlu0 %v1221, 32
    %v1224 = vpop.permute.xlu0 %1223
    %vm1226 = vcmask 259077
    %v1227 = vsel %vm1226, %v1224, 0.0
    %1228 = vadd.xlane.f32.xlu0 %v1227
    %v1229 = vpop.xlane.xlu0 %1228
    %v1230 = vrot.slane %v59, 4
    %1231 = vrot.lane.b32.xlu0 %v1230, 96
    %v1232 = vpop.permute.xlu0 %1231
    %v1234 = vmul.f32 %v1137, %v1232
    %1236 = vrot.lane.b32.xlu0 %v1234, 32
    %v1237 = vpop.permute.xlu0 %1236
    %vm1239 = vcmask 260102
    %v1240 = vsel %vm1239, %v1237, 0.0
    %1241 = vadd.xlane.f32.xlu0 %v1240
    %v1242 = vpop.xlane.xlu0 %1241
    %v1243 = vrot.slane %v59, 3
    %1244 = vrot.lane.b32.xlu0 %v1243, 96
    %v1245 = vpop.permute.xlu0 %1244
    %v1247 = vmul.f32 %v1202, %v1245
    %1249 = vrot.lane.b32.xlu0 %v1247, 32
    %v1250 = vpop.permute.xlu0 %1249
    %vm1252 = vcmask 261127
    %v1253 = vsel %vm1252, %v1250, 0.0
    %1254 = vadd.xlane.f32.xlu0 %v1253
    %v1255 = vpop.xlane.xlu0 %1254
    %v1257 = vrot.slane %v1229, 1
    %v1260 = vrot.slane %v1242, 2
    %v1263 = vrot.slane %v1255, 3
    %vm1265 = vcmask 7168
    %v1266 = vsel %vm1265, %v1216, %v1257
    %vm1267 = vcmask 15360
    %v1268 = vsel %vm1267, %v1266, %v1260
    %vm1269 = vcmask 23552
    %v1270 = vsel %vm1269, %v1268, %v1263
    %1271 = vset.pattern.permute.xlu0 32
    %1272 = vperm.xlu0 %1271, %v59
    %v1273 = vpop.permute.xlu0 %1272
    %v1274 = vrot.slane %v1273, 6
    %v1276 = vadd.f32 %v1270, %v1274
    %v1277 = vmax.f32 %v1276, 0.0
    %vm1278 = vcmask 28676
    %1279 = vst.msk [vmem:[#allocation8 - $0x4] sm:$0x10] %vm1278, %v1277
    // Predicated region
    $region26: #{tpu_custom_call.1} parent=1 // pred_check
      _
    $region27: #{tpu_custom_call.1} parent=1 // pred_check_branch
      %1281 = sbr.rel (0) target = $region29
    $region28: #{tpu_custom_call.1} parent=1 // pred_region
      %1283 = vsyncadd [#allocation4], 0
      %s1285 = sshll.u32 [#allocation8], 4
      %s1286 = int_to_ptr.vmem [resolvable:$true] %s1285
      %s1287 = sshll.u32 %s3, 4
      %s1288 = int_to_ptr.hbm [resolvable:$true] %s1287
      %1290 = dma.vmem_to_hbm [thread:$0]  %s1286, 16, %s1288, [#allocation4]
    $region29: #{tpu_custom_call.1} parent=1 // pred_fallthru
      _
    // Predicated region
    $region30: #{tpu_custom_call.1} parent=1 // pred_check
      _
    $region31: #{tpu_custom_call.1} parent=1 // pred_check_branch
      %1292 = sbr.rel (0) target = $region33
    $region32: #{tpu_custom_call.1} parent=1 // pred_region
      %1294 = dma.done [#allocation4], 16
    $region33: #{tpu_custom_call.1} parent=1 // pred_fallthru
      _
    %1295 = vsyncpa [#allocation3], 1
    %1296 = vsyncpa [#allocation6], 1
    %1297 = vsyncpa [#allocation4], 1

</llo_original>
